<compile_context>
chip_gen: v7x
topology: tpu7x:2x2x1
jax: 0.10.0
libtpu: 0.0.40
codegen_flags: <defaults>
</compile_context>

<pallas_src>
import functools

import jax
import jax.numpy as jnp
from jax import lax
from jax.experimental import pallas as pl
from jax.experimental.pallas import tpu as pltpu


_PREC = jax.lax.Precision.HIGHEST


def _round_up(x, m):
    return ((x + m - 1) // m) * m


def _dot_nt(a, b):
    """a @ b^T: contract the last dim of both operands (MXU, f32 accumulate)."""
    return lax.dot_general(
        a, b, (((1,), (1,)), ((), ())),
        preferred_element_type=jnp.float32, precision=_PREC)


def _dot_nn(a, b):
    """Plain a @ b (MXU, f32 accumulate)."""
    return jnp.dot(a, b, preferred_element_type=jnp.float32, precision=_PREC)


# ---------------------------------------------------------------------------
# Small-batch kernel (M < 128): natural layout, single invocation.
# ---------------------------------------------------------------------------
def _mlp_kernel_small(x_ref, wi_ref, bi_ref, wh_ref, bh_ref, o_ref):
    # x: (M, S); weights in native PyTorch (out, in) layout; bias (1, H).
    h = jnp.tanh(_dot_nt(x_ref[...], wi_ref[...]) + bi_ref[...])
    n_layers = wh_ref.shape[0]  # static
    for i in range(n_layers):   # short fixed trip count -> statically unrolled
        h = jnp.tanh(_dot_nt(h, wh_ref[i]) + bh_ref[i])
    # Extra application of the LAST hidden layer (matches all_layers[-1] reuse).
    h = jnp.tanh(_dot_nt(h, wh_ref[n_layers - 1]) + bh_ref[n_layers - 1])
    o_ref[...] = h.astype(o_ref.dtype)


def _forward_small(x, w_in, b_in, w_hid, b_hid):
    M, S = x.shape
    H = w_in.shape[0]
    L = w_hid.shape[0]

    bi = b_in.reshape(1, H)
    bh = b_hid.reshape(L, 1, H)

    return pl.pallas_call(
        _mlp_kernel_small,
        out_shape=jax.ShapeDtypeStruct((M, H), x.dtype),
        grid=(1,),
        in_specs=[
            pl.BlockSpec((M, S), lambda i: (0, 0)),
            pl.BlockSpec((H, S), lambda i: (0, 0)),
            pl.BlockSpec((1, H), lambda i: (0, 0)),
            pl.BlockSpec((L, H, H), lambda i: (0, 0, 0)),
            pl.BlockSpec((L, 1, H), lambda i: (0, 0, 0)),
        ],
        out_specs=pl.BlockSpec((M, H), lambda i: (0, 0)),
    )(x, w_in, bi, w_hid, bh)


# ---------------------------------------------------------------------------
# Large-batch kernel (M >= 128): grid over batch tiles, lane-dense transposed
# activations, inner <=512-wide lane-chunk loop to bound vreg pressure.
# ---------------------------------------------------------------------------
def _mlp_kernel_wide(x_ref, wi_ref, bi_ref, wh_ref, bh_ref, oT_ref, *, chunk):
    n_layers = wh_ref.shape[0]   # static
    tm = x_ref.shape[0]          # static; multiple of `chunk` by construction
    n_chunks = tm // chunk

    def body(j, carry):
        c0 = pl.multiple_of(j * chunk, 128)
        x_c = x_ref[pl.ds(c0, chunk), :]             # (chunk, S) natural block
        # First layer directly in transposed form: hT = W_in @ x_c^T.
        h = jnp.tanh(_dot_nt(wi_ref[...], x_c) + bi_ref[...])   # (H, chunk)
        for i in range(n_layers):
            h = jnp.tanh(_dot_nn(wh_ref[i], h) + bh_ref[i])
        # Extra application of the LAST hidden layer (all_layers[-1] reuse).
        h = jnp.tanh(_dot_nn(wh_ref[n_layers - 1], h) + bh_ref[n_layers - 1])
        oT_ref[:, pl.ds(c0, chunk)] = h.astype(oT_ref.dtype)    # lane-dense store
        return carry

    lax.fori_loop(0, n_chunks, body, 0, unroll=True)


def _forward_wide(x, w_in, b_in, w_hid, b_hid):
    M, S = x.shape
    H = w_in.shape[0]
    L = w_hid.shape[0]

    # Lane-aligned batch tile, aiming for >= 2 balanced grid steps (v7x
    # megacore), capped at 2048; tiles > 512 are rounded to a multiple of the
    # in-kernel chunk so the chunk loop tiles them exactly.
    tm = min(2048, _round_up(pl.cdiv(M, 2), 128))
    if tm > 512:
        tm = min(2048, _round_up(tm, 512))
    chunk = min(512, tm)   # live activation <= (32, 512) f32 = 16 vregs
    grid = (pl.cdiv(M, tm),)

    bi = b_in.reshape(H, 1)
    bh = b_hid.reshape(L, H, 1)

    itemsize = jnp.dtype(x.dtype).itemsize
    flops = 2 * M * H * (S + (L + 1) * H)
    transcendentals = (L + 2) * M * H
    bytes_accessed = itemsize * (
        x.size + w_in.size + b_in.size + w_hid.size + b_hid.size + M * H)

    outT = pl.pallas_call(
        functools.partial(_mlp_kernel_wide, chunk=chunk),
        out_shape=jax.ShapeDtypeStruct((H, M), x.dtype),
        grid=grid,
        in_specs=[
            # x in natural layout: no wrapper-side x.T HBM pass.
            pl.BlockSpec((tm, S), lambda i: (i, 0)),
            # Weights / biases: constant index_map -> DMA'd once, VMEM resident.
            pl.BlockSpec((H, S), lambda i: (0, 0)),
            pl.BlockSpec((H, 1), lambda i: (0, 0)),
            pl.BlockSpec((L, H, H), lambda i: (0, 0, 0)),
            pl.BlockSpec((L, H, 1), lambda i: (0, 0, 0)),
        ],
        # Lane-dense output: batch tile on lanes -> unmasked vst.
        out_specs=pl.BlockSpec((H, tm), lambda i: (0, i)),
        compiler_params=pltpu.CompilerParams(
            dimension_semantics=("parallel",),   # megacore split on v7x
        ),
        cost_estimate=pl.CostEstimate(
            flops=flops,
            transcendentals=transcendentals,
            bytes_accessed=bytes_accessed,
        ),
    )(x, w_in, bi, w_hid, bh)

    return outT.T  # layout plumbing back to (M, H); fuses into consumers


def mymodule2_forward(x, w_in, b_in, w_hid, b_hid):
    """Fused MLP forward.

    x:     (M, S)      input batch
    w_in:  (H, S)      input-layer weight, PyTorch (out, in) layout
    b_in:  (H,)        input-layer bias
    w_hid: (L, H, H)   hidden-layer weights, PyTorch (out, in) layout
    b_hid: (L, H)      hidden-layer biases
    returns (M, H)
    """
    M = x.shape[0]
    if M < 128:
        return _forward_small(x, w_in, b_in, w_hid, b_hid)
    return _forward_wide(x, w_in, b_in, w_hid, b_hid)


def reference_forward(x, w_in, b_in, w_hid, b_hid):
    h = jnp.tanh(jnp.dot(x, w_in.T, precision=_PREC) + b_in)
    for i in range(w_hid.shape[0]):
        h = jnp.tanh(jnp.dot(h, w_hid[i].T, precision=_PREC) + b_hid[i])
    return jnp.tanh(jnp.dot(h, w_hid[-1].T, precision=_PREC) + b_hid[-1])


if __name__ == "__main__":
    n_states, n_hidden, n_layers = 32, 32, 3

    key = jax.random.PRNGKey(0)
    kx, kwi, kbi, kwh, kbh, kx2 = jax.random.split(key, 6)

    # Parameters in PyTorch layout: weight = (out_features, in_features).
    w_in = jax.random.normal(kwi, (n_hidden, n_states), dtype=jnp.float32) * 0.1
    b_in = jax.random.normal(kbi, (n_hidden,), dtype=jnp.float32) * 0.1
    w_hid = jax.random.normal(kwh, (n_layers, n_hidden, n_hidden), dtype=jnp.float32) * 0.1
    b_hid = jax.random.normal(kbh, (n_layers, n_hidden), dtype=jnp.float32) * 0.1

    # 1) Small batch (M=8): natural-layout single-shot kernel.
    x_small = jax.random.normal(kx, (8, n_states), dtype=jnp.float32)
    out_small = jax.block_until_ready(
        mymodule2_forward(x_small, w_in, b_in, w_hid, b_hid))
    ref_small = reference_forward(x_small, w_in, b_in, w_hid, b_hid)
    assert out_small.shape == (8, n_hidden)
    assert jnp.allclose(out_small, ref_small, atol=1e-5, rtol=1e-5)

    # 2) Larger batch (M=1200): grid-tiled lane-dense kernel
    #    (2 grid steps, 2 lane chunks per tile, ragged tail block).
    x_big = jax.random.normal(kx2, (1200, n_states), dtype=jnp.float32)
    out_big = jax.block_until_ready(
        mymodule2_forward(x_big, w_in, b_in, w_hid, b_hid))
    ref_big = reference_forward(x_big, w_in, b_in, w_hid, b_hid)
    assert out_big.shape == (1200, n_hidden)
    assert jnp.allclose(out_big, ref_big, atol=1e-5, rtol=1e-5)

    print("KERNEL_OK")
</pallas_src>

<mosaic_0001>
module attributes {stable_mosaic.version = 11 : i64} {
  func.func @_mlp_kernel_small(%arg0: i32, %arg1: memref<8x32xf32, #tpu.memory_space<vmem>>, %arg2: memref<32x32xf32, #tpu.memory_space<vmem>>, %arg3: memref<1x32xf32, #tpu.memory_space<vmem>>, %arg4: memref<3x32x32xf32, #tpu.memory_space<vmem>>, %arg5: memref<3x1x32xf32, #tpu.memory_space<vmem>>, %arg6: memref<8x32xf32, #tpu.memory_space<vmem>>) attributes {dimension_semantics = [#tpu.dimension_semantics<arbitrary>], iteration_bounds = array<i64: 1>, scalar_prefetch = 0 : i64, scratch_operands = 0 : i64, tpu.core_type = #tpu.core_type<tc>, window_params = [{pipeline_mode = #tpu.pipeline_mode<synchronous>, transform_indices = @transform_0, window_bounds = array<i64: 8, 32>}, {pipeline_mode = #tpu.pipeline_mode<synchronous>, transform_indices = @transform_1, window_bounds = array<i64: 32, 32>}, {pipeline_mode = #tpu.pipeline_mode<synchronous>, transform_indices = @transform_2, window_bounds = array<i64: 1, 32>}, {pipeline_mode = #tpu.pipeline_mode<synchronous>, transform_indices = @transform_3, window_bounds = array<i64: 3, 32, 32>}, {pipeline_mode = #tpu.pipeline_mode<synchronous>, transform_indices = @transform_4, window_bounds = array<i64: 3, 1, 32>}, {pipeline_mode = #tpu.pipeline_mode<synchronous>, transform_indices = @transform_5, window_bounds = array<i64: 8, 32>}]} {
    %c0 = arith.constant 0 : index
    %c0_0 = arith.constant 0 : index
    %0 = vector.load %arg1[%c0, %c0_0] : memref<8x32xf32, #tpu.memory_space<vmem>>, vector<8x32xf32>
    %c0_1 = arith.constant 0 : index
    %c0_2 = arith.constant 0 : index
    %1 = vector.load %arg2[%c0_1, %c0_2] : memref<32x32xf32, #tpu.memory_space<vmem>>, vector<32x32xf32>
    %cst = arith.constant dense<0.000000e+00> : vector<8x32xf32>
    %2 = tpu.matmul %0, %1, %cst {dimension_numbers = #tpu.dot_dimension_numbers<[1], [1], [0], [0], [0, 0, 1, 0], [], []>, precision = #tpu.contract_precision<fp32>} : vector<8x32xf32>, vector<32x32xf32>, vector<8x32xf32> -> vector<8x32xf32>
    %c0_3 = arith.constant 0 : index
    %c0_4 = arith.constant 0 : index
    %3 = vector.load %arg3[%c0_3, %c0_4] : memref<1x32xf32, #tpu.memory_space<vmem>>, vector<1x32xf32>
    %4 = vector.broadcast %3 : vector<1x32xf32> to vector<8x32xf32>
    %5 = arith.addf %2, %4 : vector<8x32xf32>
    %6 = math.tanh %5 : vector<8x32xf32>
    %c0_5 = arith.constant 0 : index
    %c0_6 = arith.constant 0 : index
    %c0_7 = arith.constant 0 : index
    %7 = vector.load %arg4[%c0_5, %c0_6, %c0_7] : memref<3x32x32xf32, #tpu.memory_space<vmem>>, vector<1x32x32xf32>
    %8 = vector.shape_cast %7 : vector<1x32x32xf32> to vector<32x32xf32>
    %cst_8 = arith.constant dense<0.000000e+00> : vector<8x32xf32>
    %9 = tpu.matmul %6, %8, %cst_8 {dimension_numbers = #tpu.dot_dimension_numbers<[1], [1], [0], [0], [0, 0, 1, 0], [], []>, precision = #tpu.contract_precision<fp32>} : vector<8x32xf32>, vector<32x32xf32>, vector<8x32xf32> -> vector<8x32xf32>
    %c0_9 = arith.constant 0 : index
    %c0_10 = arith.constant 0 : index
    %c0_11 = arith.constant 0 : index
    %10 = vector.load %arg5[%c0_9, %c0_10, %c0_11] : memref<3x1x32xf32, #tpu.memory_space<vmem>>, vector<1x1x32xf32>
    %11 = vector.shape_cast %10 : vector<1x1x32xf32> to vector<1x32xf32>
    %12 = vector.broadcast %11 : vector<1x32xf32> to vector<8x32xf32>
    %13 = arith.addf %9, %12 : vector<8x32xf32>
    %14 = math.tanh %13 : vector<8x32xf32>
    %c1 = arith.constant 1 : index
    %c0_12 = arith.constant 0 : index
    %c0_13 = arith.constant 0 : index
    %15 = vector.load %arg4[%c1, %c0_12, %c0_13] : memref<3x32x32xf32, #tpu.memory_space<vmem>>, vector<1x32x32xf32>
    %16 = vector.shape_cast %15 : vector<1x32x32xf32> to vector<32x32xf32>
    %cst_14 = arith.constant dense<0.000000e+00> : vector<8x32xf32>
    %17 = tpu.matmul %14, %16, %cst_14 {dimension_numbers = #tpu.dot_dimension_numbers<[1], [1], [0], [0], [0, 0, 1, 0], [], []>, precision = #tpu.contract_precision<fp32>} : vector<8x32xf32>, vector<32x32xf32>, vector<8x32xf32> -> vector<8x32xf32>
    %c1_15 = arith.constant 1 : index
    %c0_16 = arith.constant 0 : index
    %c0_17 = arith.constant 0 : index
    %18 = vector.load %arg5[%c1_15, %c0_16, %c0_17] : memref<3x1x32xf32, #tpu.memory_space<vmem>>, vector<1x1x32xf32>
    %19 = vector.shape_cast %18 : vector<1x1x32xf32> to vector<1x32xf32>
    %20 = vector.broadcast %19 : vector<1x32xf32> to vector<8x32xf32>
    %21 = arith.addf %17, %20 : vector<8x32xf32>
    %22 = math.tanh %21 : vector<8x32xf32>
    %c2 = arith.constant 2 : index
    %c0_18 = arith.constant 0 : index
    %c0_19 = arith.constant 0 : index
    %23 = vector.load %arg4[%c2, %c0_18, %c0_19] : memref<3x32x32xf32, #tpu.memory_space<vmem>>, vector<1x32x32xf32>
    %24 = vector.shape_cast %23 : vector<1x32x32xf32> to vector<32x32xf32>
    %cst_20 = arith.constant dense<0.000000e+00> : vector<8x32xf32>
    %25 = tpu.matmul %22, %24, %cst_20 {dimension_numbers = #tpu.dot_dimension_numbers<[1], [1], [0], [0], [0, 0, 1, 0], [], []>, precision = #tpu.contract_precision<fp32>} : vector<8x32xf32>, vector<32x32xf32>, vector<8x32xf32> -> vector<8x32xf32>
    %c2_21 = arith.constant 2 : index
    %c0_22 = arith.constant 0 : index
    %c0_23 = arith.constant 0 : index
    %26 = vector.load %arg5[%c2_21, %c0_22, %c0_23] : memref<3x1x32xf32, #tpu.memory_space<vmem>>, vector<1x1x32xf32>
    %27 = vector.shape_cast %26 : vector<1x1x32xf32> to vector<1x32xf32>
    %28 = vector.broadcast %27 : vector<1x32xf32> to vector<8x32xf32>
    %29 = arith.addf %25, %28 : vector<8x32xf32>
    %30 = math.tanh %29 : vector<8x32xf32>
    %c2_24 = arith.constant 2 : index
    %c0_25 = arith.constant 0 : index
    %c0_26 = arith.constant 0 : index
    %31 = vector.load %arg4[%c2_24, %c0_25, %c0_26] : memref<3x32x32xf32, #tpu.memory_space<vmem>>, vector<1x32x32xf32>
    %32 = vector.shape_cast %31 : vector<1x32x32xf32> to vector<32x32xf32>
    %cst_27 = arith.constant dense<0.000000e+00> : vector<8x32xf32>
    %33 = tpu.matmul %30, %32, %cst_27 {dimension_numbers = #tpu.dot_dimension_numbers<[1], [1], [0], [0], [0, 0, 1, 0], [], []>, precision = #tpu.contract_precision<fp32>} : vector<8x32xf32>, vector<32x32xf32>, vector<8x32xf32> -> vector<8x32xf32>
    %c2_28 = arith.constant 2 : index
    %c0_29 = arith.constant 0 : index
    %c0_30 = arith.constant 0 : index
    %34 = vector.load %arg5[%c2_28, %c0_29, %c0_30] : memref<3x1x32xf32, #tpu.memory_space<vmem>>, vector<1x1x32xf32>
    %35 = vector.shape_cast %34 : vector<1x1x32xf32> to vector<1x32xf32>
    %36 = vector.broadcast %35 : vector<1x32xf32> to vector<8x32xf32>
    %37 = arith.addf %33, %36 : vector<8x32xf32>
    %38 = math.tanh %37 : vector<8x32xf32>
    %c0_31 = arith.constant 0 : index
    %c0_32 = arith.constant 0 : index
    %39 = vector.load %arg6[%c0_31, %c0_32] : memref<8x32xf32, #tpu.memory_space<vmem>>, vector<8x32xf32>
    tpu.vector_store %arg6[%c0_31, %c0_32], %38 {strides = array<i32>} : memref<8x32xf32, #tpu.memory_space<vmem>>, vector<8x32xf32>,
    return
  }
  func.func @transform_0(%arg0: i32) -> (i32, i32) {
    %c0_i32 = arith.constant 0 : i32
    %c0_i32_0 = arith.constant 0 : i32
    %c0_i32_1 = arith.constant 0 : i32
    return %c0_i32, %c0_i32_0 : i32, i32
  }
  func.func @transform_1(%arg0: i32) -> (i32, i32) {
    %c0_i32 = arith.constant 0 : i32
    %c0_i32_0 = arith.constant 0 : i32
    %c0_i32_1 = arith.constant 0 : i32
    return %c0_i32, %c0_i32_0 : i32, i32
  }
  func.func @transform_2(%arg0: i32) -> (i32, i32) {
    %c0_i32 = arith.constant 0 : i32
    %c0_i32_0 = arith.constant 0 : i32
    %c0_i32_1 = arith.constant 0 : i32
    return %c0_i32, %c0_i32_0 : i32, i32
  }
  func.func @transform_3(%arg0: i32) -> (i32, i32, i32) {
    %c0_i32 = arith.constant 0 : i32
    %c0_i32_0 = arith.constant 0 : i32
    %c0_i32_1 = arith.constant 0 : i32
    %c0_i32_2 = arith.constant 0 : i32
    return %c0_i32, %c0_i32_0, %c0_i32_1 : i32, i32, i32
  }
  func.func @transform_4(%arg0: i32) -> (i32, i32, i32) {
    %c0_i32 = arith.constant 0 : i32
    %c0_i32_0 = arith.constant 0 : i32
    %c0_i32_1 = arith.constant 0 : i32
    %c0_i32_2 = arith.constant 0 : i32
    return %c0_i32, %c0_i32_0, %c0_i32_1 : i32, i32, i32
  }
  func.func @transform_5(%arg0: i32) -> (i32, i32) {
    %c0_i32 = arith.constant 0 : i32
    %c0_i32_0 = arith.constant 0 : i32
    %c0_i32_1 = arith.constant 0 : i32
    return %c0_i32, %c0_i32_0 : i32, i32
  }
}

</mosaic_0001>

<llo_original>
// kernel: tpu_custom_call.1
$region0: #{tpu_custom_call.1}
  #allocation0 [shape = 'u32[]', space=smem, size = 0x4, offset = 0x4, fixed_abs, tag = 'smem constant byte address 0x4 - core index']
  #allocation1 [shape = 'u32[144,128]{1,0:T(1,128)}', space=vmem, size = 0x12000, scoped, tag = 'internal scratch']
  %s0 = inlined_call_operand.hbm [shape: f32[8,32], index: 0, kind: input, shape index: {}]
  %s1 = inlined_call_operand.hbm [shape: f32[32,32], index: 1, kind: input, shape index: {}]
  %s2 = inlined_call_operand.vmem [shape: f32[1,32], index: 2, kind: input, shape index: {}]
  %s3 = inlined_call_operand.hbm [shape: f32[3,32,32], index: 3, kind: input, shape index: {}]
  %s4 = inlined_call_operand.vmem [shape: f32[3,1,32], index: 4, kind: input, shape index: {}]
  %s5 = inlined_call_operand.hbm [shape: f32[8,32], index: 5, kind: output, shape index: {}]
  %s6 = sld [smem:[#allocation0]]
  $region42: #{tpu_custom_call.1} parent=0
    _
  %s8 = ssub.s32 1, %s6
  %s9 = scalar_select 0, %s8, %s6
  $region1: #{tpu_custom_call.1} parent=0
    #allocation2 [shape = 'u8[4096]{0}', space=vmem, size = 0x1000, scoped, tag = 'input window, operand 0, single buffered']
    #allocation3 [shape = 's32[1]{0}', space=sflag, size = 0x4, scoped, tag = 'scoped memory for tpu_custom_call.1']
    #allocation4 [shape = 's32[1]{0}', space=sflag, size = 0x4, scoped, tag = 'scoped memory for tpu_custom_call.1']
    #allocation5 [shape = 'u8[16384]{0}', space=vmem, size = 0x4000, scoped, tag = 'input window, operand 1, single buffered']
    #allocation6 [shape = 's32[1]{0}', space=sflag, size = 0x4, scoped, tag = 'scoped memory for tpu_custom_call.1']
    #allocation7 [shape = 'u8[49152]{0}', space=vmem, size = 0xc000, scoped, tag = 'input window, operand 3, single buffered']
    #allocation8 [shape = 'u8[4096]{0}', space=vmem, size = 0x1000, scoped, tag = 'output window, operand 0, single buffered']
    %10 = vsyncpa [#allocation3], 0
    %11 = vsyncpa [#allocation6], 0
    %12 = vsyncpa [#allocation4], 0
    // Predicated region
    $region2: #{tpu_custom_call.1} parent=1 // pred_check
      _
    $region3: #{tpu_custom_call.1} parent=1 // pred_check_branch
      %14 = sbr.rel (0) target = $region5
    $region4: #{tpu_custom_call.1} parent=1 // pred_region
      %s16 = ssub.s32 128, 128
      %17 = vsyncadd [#allocation3], %s16
      %s19 = sshll.u32 [#allocation2], 4
      %s20 = int_to_ptr.vmem [resolvable:$true] %s19
      %22 = dma.hbm_to_vmem [thread:$0]  %s0, 128, %s20, [#allocation3]
    $region5: #{tpu_custom_call.1} parent=1 // pred_fallthru
      _
    // Predicated region
    $region6: #{tpu_custom_call.1} parent=1 // pred_check
      _
    $region7: #{tpu_custom_call.1} parent=1 // pred_check_branch
      %24 = sbr.rel (0) target = $region9
    $region8: #{tpu_custom_call.1} parent=1 // pred_region
      %s26 = ssub.s32 512, 512
      %27 = vsyncadd [#allocation6], %s26
      %s28 = sshll.u32 [#allocation5], 4
      %s29 = int_to_ptr.vmem [resolvable:$true] %s28
      %34 = dma.hbm_to_vmem [thread:$0]  %s1, 512, %s29, [#allocation6], 128, 128, 8
    $region9: #{tpu_custom_call.1} parent=1 // pred_fallthru
      _
    // Predicated region
    $region10: #{tpu_custom_call.1} parent=1 // pred_check
      _
    $region11: #{tpu_custom_call.1} parent=1 // pred_check_branch
      %36 = sbr.rel (0) target = $region13
    $region12: #{tpu_custom_call.1} parent=1 // pred_region
      _
    $region13: #{tpu_custom_call.1} parent=1 // pred_fallthru
      _
    // Predicated region
    $region14: #{tpu_custom_call.1} parent=1 // pred_check
      _
    $region15: #{tpu_custom_call.1} parent=1 // pred_check_branch
      %38 = sbr.rel (0) target = $region17
    $region16: #{tpu_custom_call.1} parent=1 // pred_region
      %s40 = ssub.s32 1536, 1536
      %41 = vsyncadd [#allocation6], %s40
      %s42 = sshll.u32 [#allocation7], 4
      %s43 = int_to_ptr.vmem [resolvable:$true] %s42
      %48 = dma.hbm_to_vmem [thread:$0]  %s3, 1536, %s43, [#allocation6], 128, 128, 8
    $region17: #{tpu_custom_call.1} parent=1 // pred_fallthru
      _
    // Predicated region
    $region18: #{tpu_custom_call.1} parent=1 // pred_check
      _
    $region19: #{tpu_custom_call.1} parent=1 // pred_check_branch
      %50 = sbr.rel (0) target = $region21
    $region20: #{tpu_custom_call.1} parent=1 // pred_region
      _
    $region21: #{tpu_custom_call.1} parent=1 // pred_fallthru
      _
    // Predicated region
    $region22: #{tpu_custom_call.1} parent=1 // pred_check
      _
    $region23: #{tpu_custom_call.1} parent=1 // pred_check_branch
      %52 = sbr.rel (0) target = $region25
    $region24: #{tpu_custom_call.1} parent=1 // pred_region
      %53 = dma.done [#allocation3], 128
    $region25: #{tpu_custom_call.1} parent=1 // pred_fallthru
      _
    // Predicated region
    $region26: #{tpu_custom_call.1} parent=1 // pred_check
      _
    $region27: #{tpu_custom_call.1} parent=1 // pred_check_branch
      %55 = sbr.rel (0) target = $region29
    $region28: #{tpu_custom_call.1} parent=1 // pred_region
      %56 = dma.done [#allocation6], 512
    $region29: #{tpu_custom_call.1} parent=1 // pred_fallthru
      _
    // Predicated region
    $region30: #{tpu_custom_call.1} parent=1 // pred_check
      _
    $region31: #{tpu_custom_call.1} parent=1 // pred_check_branch
      %58 = sbr.rel (0) target = $region33
    $region32: #{tpu_custom_call.1} parent=1 // pred_region
      %59 = dma.done [#allocation6], 1536
    $region33: #{tpu_custom_call.1} parent=1 // pred_fallthru
      _
    %v60 = vld [vmem:[#allocation2] sm:$0xff]
    %v61 = vld [vmem:[#allocation5] sm:$0xff]
    %v62 = vld [vmem:[#allocation5 + $0x8] sm:$0xff]
    %v63 = vld [vmem:[#allocation5 + $0x10] sm:$0xff]
    %v64 = vld [vmem:[#allocation5 + $0x18] sm:$0xff]
    %v65 = vld [vmem:[%s2] sm:$0x1]
    %v67 = vlaneseq
    %v68 = vshrl.u32 %v67, 7
    %v69 = vsub.s32 0, %v68
    %v70 = vrot.slane %v65, %v69
    %vm72 = vcmask 261120
    %v74 = vsel %vm72, %v60, 0
    %v77 = vsel %vm72, %v61, 0
    %v80 = vsel %vm72, %v62, 0
    %v83 = vsel %vm72, %v63, 0
    %v86 = vsel %vm72, %v64, 0
    %88 = vmatprep.subr.mxu0 0.0
    %v89 = vand.u32 %v77, 4294901760
    %90 = vmatpush1.xpose.msra.mxu0 %v89
    %91 = vmatprep.subr.mxu0 0.0
    %v92 = vand.u32 %v80, 4294901760
    %93 = vmatpush1.xpose.msra.mxu0 %v92
    %94 = vmatprep.subr.mxu0 0.0
    %v95 = vand.u32 %v83, 4294901760
    %96 = vmatpush1.xpose.msra.mxu0 %v95
    %97 = vmatprep.subr.mxu0 0.0
    %v98 = vand.u32 %v86, 4294901760
    %99 = vmatpush1.xpose.msra.mxu0 %v98
    %100 = vmatprep.subr.mxu0 0.0
    %101 = vmatpush1.xpose.msra.mxu0 0.0
    %102 = vmatprep.subr.mxu0 0.0
    %103 = vmatpush1.xpose.msra.mxu0 0.0
    %104 = vmatprep.subr.mxu0 0.0
    %105 = vmatpush1.xpose.msra.mxu0 0.0
    %106 = vmatprep.subr.mxu0 0.0
    %107 = vmatpush1.xpose.msra.mxu0 0.0
    %108 = vmatprep.subr.mxu0 0.0
    %109 = vmatpush1.xpose.msra.mxu0 0.0
    %110 = vmatprep.subr.mxu0 0.0
    %111 = vmatpush1.xpose.msra.mxu0 0.0
    %112 = vmatprep.subr.mxu0 0.0
    %113 = vmatpush1.xpose.msra.mxu0 0.0
    %114 = vmatprep.subr.mxu0 0.0
    %115 = vmatpush1.xpose.msra.mxu0 0.0
    %116 = vmatprep.subr.mxu0 0.0
    %117 = vmatpush1.xpose.msra.mxu0 0.0
    %118 = vmatprep.subr.mxu0 0.0
    %119 = vmatpush1.xpose.msra.mxu0 0.0
    %120 = vmatprep.subr.mxu0 0.0
    %121 = vmatpush1.xpose.msra.mxu0 0.0
    %122 = vmatprep.subr.mxu0 0.0
    %123 = vmatpush1.xpose.msra.mxu0 0.0
    %124 = vmatprep.subr.mxu0 0.0
    %125 = vmatpush1.xpose.msra.mxu0 0.0
    %126 = vmatprep.subr.mxu0 0.0
    %127 = vmatpush1.xpose.msra.mxu0 0.0
    %128 = vmatprep.subr.mxu0 0.0
    %129 = vmatpush1.xpose.msra.mxu0 0.0
    %130 = vmatprep.subr.mxu0 0.0
    %131 = vmatpush1.xpose.msra.mxu0 0.0
    %132 = vmatprep.subr.mxu0 0.0
    %133 = vmatpush1.xpose.msra.mxu0 0.0
    %134 = vmatprep.subr.mxu0 0.0
    %135 = vmatpush1.xpose.msra.mxu0 0.0
    %136 = vmatprep.subr.mxu0 0.0
    %137 = vmatpush1.xpose.msra.mxu0 0.0
    %138 = vmatprep.subr.mxu0 0.0
    %139 = vmatpush1.xpose.msra.mxu0 0.0
    %140 = vmatprep.subr.mxu0 0.0
    %141 = vmatpush1.xpose.msra.mxu0 0.0
    %142 = vmatprep.subr.mxu0 0.0
    %143 = vmatpush1.xpose.msra.mxu0 0.0
    %144 = vmatprep.subr.mxu0 0.0
    %145 = vmatpush1.xpose.msra.mxu0 0.0
    %146 = vmatprep.subr.mxu0 0.0
    %147 = vmatpush1.xpose.msra.mxu0 0.0
    %148 = vmatprep.subr.mxu0 0.0
    %149 = vmatpush1.xpose.msra.mxu0 0.0
    %150 = vmatprep.subr.mxu0 0.0
    %151 = vmatpush1.xpose.msra.mxu0 0.0
    %152 = vmatprep.subr.mxu0 0.0
    %153 = vmatpush1.xpose.msra.mxu0 0.0
    %154 = vmatprep.subr.mxu0 0.0
    %155 = vmatpush1.xpose.msra.mxu0 0.0
    %156 = vmatprep.mubr.f32.mxu0 0.0
    %v157 = vand.u32 %v74, 4294901760
    %v158 = vsub.f32 %v74, %v157
    %v159 = vand.u32 %v158, 4294901760
    %v160 = vsub.f32 %v158, %v159
    %v161 = vand.u32 %v160, 4294901760
    %162 = vmatmul.mubr.f32.gmra.mrb[0].mxu0 %v161
    %v163 = vpop.f32.mrb[0].mxu0
    %v164 = vadd.f32 %v70, %v163
    %v165 = vpop.f32.mrb[0].mxu0
    %166 = vdwg.mxu0
    %167 = vmatprep.subr.mxu0 0.0
    %v168 = vand.u32 %v77, 4294901760
    %v169 = vsub.f32 %v77, %v168
    %v170 = vand.u32 %v169, 4294901760
    %v171 = vsub.f32 %v169, %v170
    %v172 = vand.u32 %v171, 4294901760
    %173 = vmatpush1.xpose.msra.mxu0 %v172
    %174 = vmatprep.subr.mxu0 0.0
    %v175 = vand.u32 %v80, 4294901760
    %v176 = vsub.f32 %v80, %v175
    %v177 = vand.u32 %v176, 4294901760
    %v178 = vsub.f32 %v176, %v177
    %v179 = vand.u32 %v178, 4294901760
    %180 = vmatpush1.xpose.msra.mxu0 %v179
    %181 = vmatprep.subr.mxu0 0.0
    %v182 = vand.u32 %v83, 4294901760
    %v183 = vsub.f32 %v83, %v182
    %v184 = vand.u32 %v183, 4294901760
    %v185 = vsub.f32 %v183, %v184
    %v186 = vand.u32 %v185, 4294901760
    %187 = vmatpush1.xpose.msra.mxu0 %v186
    %188 = vmatprep.subr.mxu0 0.0
    %v189 = vand.u32 %v86, 4294901760
    %v190 = vsub.f32 %v86, %v189
    %v191 = vand.u32 %v190, 4294901760
    %v192 = vsub.f32 %v190, %v191
    %v193 = vand.u32 %v192, 4294901760
    %194 = vmatpush1.xpose.msra.mxu0 %v193
    %195 = vmatprep.subr.mxu0 0.0
    %196 = vmatpush1.xpose.msra.mxu0 0.0
    %197 = vmatprep.subr.mxu0 0.0
    %198 = vmatpush1.xpose.msra.mxu0 0.0
    %199 = vmatprep.subr.mxu0 0.0
    %200 = vmatpush1.xpose.msra.mxu0 0.0
    %201 = vmatprep.subr.mxu0 0.0
    %202 = vmatpush1.xpose.msra.mxu0 0.0
    %203 = vmatprep.subr.mxu0 0.0
    %204 = vmatpush1.xpose.msra.mxu0 0.0
    %205 = vmatprep.subr.mxu0 0.0
    %206 = vmatpush1.xpose.msra.mxu0 0.0
    %207 = vmatprep.subr.mxu0 0.0
    %208 = vmatpush1.xpose.msra.mxu0 0.0
    %209 = vmatprep.subr.mxu0 0.0
    %210 = vmatpush1.xpose.msra.mxu0 0.0
    %211 = vmatprep.subr.mxu0 0.0
    %212 = vmatpush1.xpose.msra.mxu0 0.0
    %213 = vmatprep.subr.mxu0 0.0
    %214 = vmatpush1.xpose.msra.mxu0 0.0
    %215 = vmatprep.subr.mxu0 0.0
    %216 = vmatpush1.xpose.msra.mxu0 0.0
    %217 = vmatprep.subr.mxu0 0.0
    %218 = vmatpush1.xpose.msra.mxu0 0.0
    %219 = vmatprep.subr.mxu0 0.0
    %220 = vmatpush1.xpose.msra.mxu0 0.0
    %221 = vmatprep.subr.mxu0 0.0
    %222 = vmatpush1.xpose.msra.mxu0 0.0
    %223 = vmatprep.subr.mxu0 0.0
    %224 = vmatpush1.xpose.msra.mxu0 0.0
    %225 = vmatprep.subr.mxu0 0.0
    %226 = vmatpush1.xpose.msra.mxu0 0.0
    %227 = vmatprep.subr.mxu0 0.0
    %228 = vmatpush1.xpose.msra.mxu0 0.0
    %229 = vmatprep.subr.mxu0 0.0
    %230 = vmatpush1.xpose.msra.mxu0 0.0
    %231 = vmatprep.subr.mxu0 0.0
    %232 = vmatpush1.xpose.msra.mxu0 0.0
    %233 = vmatprep.subr.mxu0 0.0
    %234 = vmatpush1.xpose.msra.mxu0 0.0
    %235 = vmatprep.subr.mxu0 0.0
    %236 = vmatpush1.xpose.msra.mxu0 0.0
    %237 = vmatprep.subr.mxu0 0.0
    %238 = vmatpush1.xpose.msra.mxu0 0.0
    %239 = vmatprep.subr.mxu0 0.0
    %240 = vmatpush1.xpose.msra.mxu0 0.0
    %241 = vmatprep.subr.mxu0 0.0
    %242 = vmatpush1.xpose.msra.mxu0 0.0
    %243 = vmatprep.subr.mxu0 0.0
    %244 = vmatpush1.xpose.msra.mxu0 0.0
    %245 = vmatprep.subr.mxu0 0.0
    %246 = vmatpush1.xpose.msra.mxu0 0.0
    %247 = vmatprep.subr.mxu0 0.0
    %248 = vmatpush1.xpose.msra.mxu0 0.0
    %249 = vmatprep.subr.mxu0 0.0
    %250 = vmatpush1.xpose.msra.mxu0 0.0
    %251 = vmatprep.mubr.f32.mxu0 0.0
    %v252 = vand.u32 %v74, 4294901760
    %253 = vmatmul.mubr.f32.gmra.mrb[0].mxu0 %v252
    %v254 = vpop.f32.mrb[0].mxu0
    %v255 = vadd.f32 %v164, %v254
    %v256 = vpop.f32.mrb[0].mxu0
    %257 = vdwg.mxu0
    %258 = vmatprep.subr.mxu0 0.0
    %v259 = vand.u32 %v77, 4294901760
    %v260 = vsub.f32 %v77, %v259
    %261 = vmatpush1.xpose.msra.mxu0 %v260
    %262 = vmatprep.subr.mxu0 0.0
    %v263 = vand.u32 %v80, 4294901760
    %v264 = vsub.f32 %v80, %v263
    %265 = vmatpush1.xpose.msra.mxu0 %v264
    %266 = vmatprep.subr.mxu0 0.0
    %v267 = vand.u32 %v83, 4294901760
    %v268 = vsub.f32 %v83, %v267
    %269 = vmatpush1.xpose.msra.mxu0 %v268
    %270 = vmatprep.subr.mxu0 0.0
    %v271 = vand.u32 %v86, 4294901760
    %v272 = vsub.f32 %v86, %v271
    %273 = vmatpush1.xpose.msra.mxu0 %v272
    %274 = vmatprep.subr.mxu0 0.0
    %275 = vmatpush1.xpose.msra.mxu0 0.0
    %276 = vmatprep.subr.mxu0 0.0
    %277 = vmatpush1.xpose.msra.mxu0 0.0
    %278 = vmatprep.subr.mxu0 0.0
    %279 = vmatpush1.xpose.msra.mxu0 0.0
    %280 = vmatprep.subr.mxu0 0.0
    %281 = vmatpush1.xpose.msra.mxu0 0.0
    %282 = vmatprep.subr.mxu0 0.0
    %283 = vmatpush1.xpose.msra.mxu0 0.0
    %284 = vmatprep.subr.mxu0 0.0
    %285 = vmatpush1.xpose.msra.mxu0 0.0
    %286 = vmatprep.subr.mxu0 0.0
    %287 = vmatpush1.xpose.msra.mxu0 0.0
    %288 = vmatprep.subr.mxu0 0.0
    %289 = vmatpush1.xpose.msra.mxu0 0.0
    %290 = vmatprep.subr.mxu0 0.0
    %291 = vmatpush1.xpose.msra.mxu0 0.0
    %292 = vmatprep.subr.mxu0 0.0
    %293 = vmatpush1.xpose.msra.mxu0 0.0
    %294 = vmatprep.subr.mxu0 0.0
    %295 = vmatpush1.xpose.msra.mxu0 0.0
    %296 = vmatprep.subr.mxu0 0.0
    %297 = vmatpush1.xpose.msra.mxu0 0.0
    %298 = vmatprep.subr.mxu0 0.0
    %299 = vmatpush1.xpose.msra.mxu0 0.0
    %300 = vmatprep.subr.mxu0 0.0
    %301 = vmatpush1.xpose.msra.mxu0 0.0
    %302 = vmatprep.subr.mxu0 0.0
    %303 = vmatpush1.xpose.msra.mxu0 0.0
    %304 = vmatprep.subr.mxu0 0.0
    %305 = vmatpush1.xpose.msra.mxu0 0.0
    %306 = vmatprep.subr.mxu0 0.0
    %307 = vmatpush1.xpose.msra.mxu0 0.0
    %308 = vmatprep.subr.mxu0 0.0
    %309 = vmatpush1.xpose.msra.mxu0 0.0
    %310 = vmatprep.subr.mxu0 0.0
    %311 = vmatpush1.xpose.msra.mxu0 0.0
    %312 = vmatprep.subr.mxu0 0.0
    %313 = vmatpush1.xpose.msra.mxu0 0.0
    %314 = vmatprep.subr.mxu0 0.0
    %315 = vmatpush1.xpose.msra.mxu0 0.0
    %316 = vmatprep.subr.mxu0 0.0
    %317 = vmatpush1.xpose.msra.mxu0 0.0
    %318 = vmatprep.subr.mxu0 0.0
    %319 = vmatpush1.xpose.msra.mxu0 0.0
    %320 = vmatprep.subr.mxu0 0.0
    %321 = vmatpush1.xpose.msra.mxu0 0.0
    %322 = vmatprep.subr.mxu0 0.0
    %323 = vmatpush1.xpose.msra.mxu0 0.0
    %324 = vmatprep.subr.mxu0 0.0
    %325 = vmatpush1.xpose.msra.mxu0 0.0
    %326 = vmatprep.subr.mxu0 0.0
    %327 = vmatpush1.xpose.msra.mxu0 0.0
    %328 = vmatprep.subr.mxu0 0.0
    %329 = vmatpush1.xpose.msra.mxu0 0.0
    %330 = vmatprep.mubr.f32.mxu0 0.0
    %v331 = vand.u32 %v74, 4294901760
    %v332 = vsub.f32 %v74, %v331
    %333 = vmatmul.mubr.f32.gmra.mrb[0].mxu0 %v332
    %v334 = vpop.f32.mrb[0].mxu0
    %v335 = vadd.f32 %v255, %v334
    %v336 = vpop.f32.mrb[0].mxu0
    %337 = vdwg.mxu0
    %338 = vmatprep.subr.mxu0 0.0
    %v339 = vand.u32 %v77, 4294901760
    %340 = vmatpush1.xpose.msra.mxu0 %v339
    %341 = vmatprep.subr.mxu0 0.0
    %v342 = vand.u32 %v80, 4294901760
    %343 = vmatpush1.xpose.msra.mxu0 %v342
    %344 = vmatprep.subr.mxu0 0.0
    %v345 = vand.u32 %v83, 4294901760
    %346 = vmatpush1.xpose.msra.mxu0 %v345
    %347 = vmatprep.subr.mxu0 0.0
    %v348 = vand.u32 %v86, 4294901760
    %349 = vmatpush1.xpose.msra.mxu0 %v348
    %350 = vmatprep.subr.mxu0 0.0
    %351 = vmatpush1.xpose.msra.mxu0 0.0
    %352 = vmatprep.subr.mxu0 0.0
    %353 = vmatpush1.xpose.msra.mxu0 0.0
    %354 = vmatprep.subr.mxu0 0.0
    %355 = vmatpush1.xpose.msra.mxu0 0.0
    %356 = vmatprep.subr.mxu0 0.0
    %357 = vmatpush1.xpose.msra.mxu0 0.0
    %358 = vmatprep.subr.mxu0 0.0
    %359 = vmatpush1.xpose.msra.mxu0 0.0
    %360 = vmatprep.subr.mxu0 0.0
    %361 = vmatpush1.xpose.msra.mxu0 0.0
    %362 = vmatprep.subr.mxu0 0.0
    %363 = vmatpush1.xpose.msra.mxu0 0.0
    %364 = vmatprep.subr.mxu0 0.0
    %365 = vmatpush1.xpose.msra.mxu0 0.0
    %366 = vmatprep.subr.mxu0 0.0
    %367 = vmatpush1.xpose.msra.mxu0 0.0
    %368 = vmatprep.subr.mxu0 0.0
    %369 = vmatpush1.xpose.msra.mxu0 0.0
    %370 = vmatprep.subr.mxu0 0.0
    %371 = vmatpush1.xpose.msra.mxu0 0.0
    %372 = vmatprep.subr.mxu0 0.0
    %373 = vmatpush1.xpose.msra.mxu0 0.0
    %374 = vmatprep.subr.mxu0 0.0
    %375 = vmatpush1.xpose.msra.mxu0 0.0
    %376 = vmatprep.subr.mxu0 0.0
    %377 = vmatpush1.xpose.msra.mxu0 0.0
    %378 = vmatprep.subr.mxu0 0.0
    %379 = vmatpush1.xpose.msra.mxu0 0.0
    %380 = vmatprep.subr.mxu0 0.0
    %381 = vmatpush1.xpose.msra.mxu0 0.0
    %382 = vmatprep.subr.mxu0 0.0
    %383 = vmatpush1.xpose.msra.mxu0 0.0
    %384 = vmatprep.subr.mxu0 0.0
    %385 = vmatpush1.xpose.msra.mxu0 0.0
    %386 = vmatprep.subr.mxu0 0.0
    %387 = vmatpush1.xpose.msra.mxu0 0.0
    %388 = vmatprep.subr.mxu0 0.0
    %389 = vmatpush1.xpose.msra.mxu0 0.0
    %390 = vmatprep.subr.mxu0 0.0
    %391 = vmatpush1.xpose.msra.mxu0 0.0
    %392 = vmatprep.subr.mxu0 0.0
    %393 = vmatpush1.xpose.msra.mxu0 0.0
    %394 = vmatprep.subr.mxu0 0.0
    %395 = vmatpush1.xpose.msra.mxu0 0.0
    %396 = vmatprep.subr.mxu0 0.0
    %397 = vmatpush1.xpose.msra.mxu0 0.0
    %398 = vmatprep.subr.mxu0 0.0
    %399 = vmatpush1.xpose.msra.mxu0 0.0
    %400 = vmatprep.subr.mxu0 0.0
    %401 = vmatpush1.xpose.msra.mxu0 0.0
    %402 = vmatprep.subr.mxu0 0.0
    %403 = vmatpush1.xpose.msra.mxu0 0.0
    %404 = vmatprep.subr.mxu0 0.0
    %405 = vmatpush1.xpose.msra.mxu0 0.0
    %406 = vmatprep.mubr.f32.mxu0 0.0
    %v407 = vand.u32 %v74, 4294901760
    %v408 = vsub.f32 %v74, %v407
    %v409 = vand.u32 %v408, 4294901760
    %410 = vmatmul.mubr.f32.gmra.mrb[0].mxu0 %v409
    %v411 = vpop.f32.mrb[0].mxu0
    %v412 = vadd.f32 %v335, %v411
    %v413 = vpop.f32.mrb[0].mxu0
    %414 = vdwg.mxu0
    %415 = vmatprep.subr.mxu0 0.0
    %v416 = vand.u32 %v77, 4294901760
    %v417 = vsub.f32 %v77, %v416
    %v418 = vand.u32 %v417, 4294901760
    %419 = vmatpush1.xpose.msra.mxu0 %v418
    %420 = vmatprep.subr.mxu0 0.0
    %v421 = vand.u32 %v80, 4294901760
    %v422 = vsub.f32 %v80, %v421
    %v423 = vand.u32 %v422, 4294901760
    %424 = vmatpush1.xpose.msra.mxu0 %v423
    %425 = vmatprep.subr.mxu0 0.0
    %v426 = vand.u32 %v83, 4294901760
    %v427 = vsub.f32 %v83, %v426
    %v428 = vand.u32 %v427, 4294901760
    %429 = vmatpush1.xpose.msra.mxu0 %v428
    %430 = vmatprep.subr.mxu0 0.0
    %v431 = vand.u32 %v86, 4294901760
    %v432 = vsub.f32 %v86, %v431
    %v433 = vand.u32 %v432, 4294901760
    %434 = vmatpush1.xpose.msra.mxu0 %v433
    %435 = vmatprep.subr.mxu0 0.0
    %436 = vmatpush1.xpose.msra.mxu0 0.0
    %437 = vmatprep.subr.mxu0 0.0
    %438 = vmatpush1.xpose.msra.mxu0 0.0
    %439 = vmatprep.subr.mxu0 0.0
    %440 = vmatpush1.xpose.msra.mxu0 0.0
    %441 = vmatprep.subr.mxu0 0.0
    %442 = vmatpush1.xpose.msra.mxu0 0.0
    %443 = vmatprep.subr.mxu0 0.0
    %444 = vmatpush1.xpose.msra.mxu0 0.0
    %445 = vmatprep.subr.mxu0 0.0
    %446 = vmatpush1.xpose.msra.mxu0 0.0
    %447 = vmatprep.subr.mxu0 0.0
    %448 = vmatpush1.xpose.msra.mxu0 0.0
    %449 = vmatprep.subr.mxu0 0.0
    %450 = vmatpush1.xpose.msra.mxu0 0.0
    %451 = vmatprep.subr.mxu0 0.0
    %452 = vmatpush1.xpose.msra.mxu0 0.0
    %453 = vmatprep.subr.mxu0 0.0
    %454 = vmatpush1.xpose.msra.mxu0 0.0
    %455 = vmatprep.subr.mxu0 0.0
    %456 = vmatpush1.xpose.msra.mxu0 0.0
    %457 = vmatprep.subr.mxu0 0.0
    %458 = vmatpush1.xpose.msra.mxu0 0.0
    %459 = vmatprep.subr.mxu0 0.0
    %460 = vmatpush1.xpose.msra.mxu0 0.0
    %461 = vmatprep.subr.mxu0 0.0
    %462 = vmatpush1.xpose.msra.mxu0 0.0
    %463 = vmatprep.subr.mxu0 0.0
    %464 = vmatpush1.xpose.msra.mxu0 0.0
    %465 = vmatprep.subr.mxu0 0.0
    %466 = vmatpush1.xpose.msra.mxu0 0.0
    %467 = vmatprep.subr.mxu0 0.0
    %468 = vmatpush1.xpose.msra.mxu0 0.0
    %469 = vmatprep.subr.mxu0 0.0
    %470 = vmatpush1.xpose.msra.mxu0 0.0
    %471 = vmatprep.subr.mxu0 0.0
    %472 = vmatpush1.xpose.msra.mxu0 0.0
    %473 = vmatprep.subr.mxu0 0.0
    %474 = vmatpush1.xpose.msra.mxu0 0.0
    %475 = vmatprep.subr.mxu0 0.0
    %476 = vmatpush1.xpose.msra.mxu0 0.0
    %477 = vmatprep.subr.mxu0 0.0
    %478 = vmatpush1.xpose.msra.mxu0 0.0
    %479 = vmatprep.subr.mxu0 0.0
    %480 = vmatpush1.xpose.msra.mxu0 0.0
    %481 = vmatprep.subr.mxu0 0.0
    %482 = vmatpush1.xpose.msra.mxu0 0.0
    %483 = vmatprep.subr.mxu0 0.0
    %484 = vmatpush1.xpose.msra.mxu0 0.0
    %485 = vmatprep.subr.mxu0 0.0
    %486 = vmatpush1.xpose.msra.mxu0 0.0
    %487 = vmatprep.subr.mxu0 0.0
    %488 = vmatpush1.xpose.msra.mxu0 0.0
    %489 = vmatprep.subr.mxu0 0.0
    %490 = vmatpush1.xpose.msra.mxu0 0.0
    %491 = vmatprep.mubr.f32.mxu0 0.0
    %v492 = vand.u32 %v74, 4294901760
    %493 = vmatmul.mubr.f32.gmra.mrb[0].mxu0 %v492
    %v494 = vpop.f32.mrb[0].mxu0
    %v495 = vadd.f32 %v412, %v494
    %v496 = vpop.f32.mrb[0].mxu0
    %497 = vdwg.mxu0
    %498 = vmatprep.subr.mxu0 0.0
    %v499 = vand.u32 %v77, 4294901760
    %500 = vmatpush1.xpose.msra.mxu0 %v499
    %501 = vmatprep.subr.mxu0 0.0
    %v502 = vand.u32 %v80, 4294901760
    %503 = vmatpush1.xpose.msra.mxu0 %v502
    %504 = vmatprep.subr.mxu0 0.0
    %v505 = vand.u32 %v83, 4294901760
    %506 = vmatpush1.xpose.msra.mxu0 %v505
    %507 = vmatprep.subr.mxu0 0.0
    %v508 = vand.u32 %v86, 4294901760
    %509 = vmatpush1.xpose.msra.mxu0 %v508
    %510 = vmatprep.subr.mxu0 0.0
    %511 = vmatpush1.xpose.msra.mxu0 0.0
    %512 = vmatprep.subr.mxu0 0.0
    %513 = vmatpush1.xpose.msra.mxu0 0.0
    %514 = vmatprep.subr.mxu0 0.0
    %515 = vmatpush1.xpose.msra.mxu0 0.0
    %516 = vmatprep.subr.mxu0 0.0
    %517 = vmatpush1.xpose.msra.mxu0 0.0
    %518 = vmatprep.subr.mxu0 0.0
    %519 = vmatpush1.xpose.msra.mxu0 0.0
    %520 = vmatprep.subr.mxu0 0.0
    %521 = vmatpush1.xpose.msra.mxu0 0.0
    %522 = vmatprep.subr.mxu0 0.0
    %523 = vmatpush1.xpose.msra.mxu0 0.0
    %524 = vmatprep.subr.mxu0 0.0
    %525 = vmatpush1.xpose.msra.mxu0 0.0
    %526 = vmatprep.subr.mxu0 0.0
    %527 = vmatpush1.xpose.msra.mxu0 0.0
    %528 = vmatprep.subr.mxu0 0.0
    %529 = vmatpush1.xpose.msra.mxu0 0.0
    %530 = vmatprep.subr.mxu0 0.0
    %531 = vmatpush1.xpose.msra.mxu0 0.0
    %532 = vmatprep.subr.mxu0 0.0
    %533 = vmatpush1.xpose.msra.mxu0 0.0
    %534 = vmatprep.subr.mxu0 0.0
    %535 = vmatpush1.xpose.msra.mxu0 0.0
    %536 = vmatprep.subr.mxu0 0.0
    %537 = vmatpush1.xpose.msra.mxu0 0.0
    %538 = vmatprep.subr.mxu0 0.0
    %539 = vmatpush1.xpose.msra.mxu0 0.0
    %540 = vmatprep.subr.mxu0 0.0
    %541 = vmatpush1.xpose.msra.mxu0 0.0
    %542 = vmatprep.subr.mxu0 0.0
    %543 = vmatpush1.xpose.msra.mxu0 0.0
    %544 = vmatprep.subr.mxu0 0.0
    %545 = vmatpush1.xpose.msra.mxu0 0.0
    %546 = vmatprep.subr.mxu0 0.0
    %547 = vmatpush1.xpose.msra.mxu0 0.0
    %548 = vmatprep.subr.mxu0 0.0
    %549 = vmatpush1.xpose.msra.mxu0 0.0
    %550 = vmatprep.subr.mxu0 0.0
    %551 = vmatpush1.xpose.msra.mxu0 0.0
    %552 = vmatprep.subr.mxu0 0.0
    %553 = vmatpush1.xpose.msra.mxu0 0.0
    %554 = vmatprep.subr.mxu0 0.0
    %555 = vmatpush1.xpose.msra.mxu0 0.0
    %556 = vmatprep.subr.mxu0 0.0
    %557 = vmatpush1.xpose.msra.mxu0 0.0
    %558 = vmatprep.subr.mxu0 0.0
    %559 = vmatpush1.xpose.msra.mxu0 0.0
    %560 = vmatprep.subr.mxu0 0.0
    %561 = vmatpush1.xpose.msra.mxu0 0.0
    %562 = vmatprep.subr.mxu0 0.0
    %563 = vmatpush1.xpose.msra.mxu0 0.0
    %564 = vmatprep.subr.mxu0 0.0
    %565 = vmatpush1.xpose.msra.mxu0 0.0
    %566 = vmatprep.mubr.f32.mxu0 0.0
    %v567 = vand.u32 %v74, 4294901760
    %568 = vmatmul.mubr.f32.gmra.mrb[0].mxu0 %v567
    %v569 = vpop.f32.mrb[0].mxu0
    %v570 = vadd.f32 %v495, %v569
    %v571 = vpop.f32.mrb[0].mxu0
    %572 = vdwg.mxu0
    %v573 = vtanh.pop %v570
    %v574 = vld [vmem:[#allocation7] sm:$0xff]
    %v575 = vld [vmem:[#allocation7 + $0x8] sm:$0xff]
    %v576 = vld [vmem:[#allocation7 + $0x10] sm:$0xff]
    %v577 = vld [vmem:[#allocation7 + $0x18] sm:$0xff]
    %v578 = vld [vmem:[%s4] sm:$0x1]
    %v580 = vlaneseq
    %v581 = vshrl.u32 %v580, 7
    %v582 = vsub.s32 0, %v581
    %v583 = vrot.slane %v578, %v582
    %v586 = vsel %vm72, %v573, 0
    %v589 = vsel %vm72, %v574, 0
    %v592 = vsel %vm72, %v575, 0
    %v595 = vsel %vm72, %v576, 0
    %v598 = vsel %vm72, %v577, 0
    %600 = vmatprep.subr.mxu0 0.0
    %v601 = vand.u32 %v589, 4294901760
    %602 = vmatpush1.xpose.msra.mxu0 %v601
    %603 = vmatprep.subr.mxu0 0.0
    %v604 = vand.u32 %v592, 4294901760
    %605 = vmatpush1.xpose.msra.mxu0 %v604
    %606 = vmatprep.subr.mxu0 0.0
    %v607 = vand.u32 %v595, 4294901760
    %608 = vmatpush1.xpose.msra.mxu0 %v607
    %609 = vmatprep.subr.mxu0 0.0
    %v610 = vand.u32 %v598, 4294901760
    %611 = vmatpush1.xpose.msra.mxu0 %v610
    %612 = vmatprep.subr.mxu0 0.0
    %613 = vmatpush1.xpose.msra.mxu0 0.0
    %614 = vmatprep.subr.mxu0 0.0
    %615 = vmatpush1.xpose.msra.mxu0 0.0
    %616 = vmatprep.subr.mxu0 0.0
    %617 = vmatpush1.xpose.msra.mxu0 0.0
    %618 = vmatprep.subr.mxu0 0.0
    %619 = vmatpush1.xpose.msra.mxu0 0.0
    %620 = vmatprep.subr.mxu0 0.0
    %621 = vmatpush1.xpose.msra.mxu0 0.0
    %622 = vmatprep.subr.mxu0 0.0
    %623 = vmatpush1.xpose.msra.mxu0 0.0
    %624 = vmatprep.subr.mxu0 0.0
    %625 = vmatpush1.xpose.msra.mxu0 0.0
    %626 = vmatprep.subr.mxu0 0.0
    %627 = vmatpush1.xpose.msra.mxu0 0.0
    %628 = vmatprep.subr.mxu0 0.0
    %629 = vmatpush1.xpose.msra.mxu0 0.0
    %630 = vmatprep.subr.mxu0 0.0
    %631 = vmatpush1.xpose.msra.mxu0 0.0
    %632 = vmatprep.subr.mxu0 0.0
    %633 = vmatpush1.xpose.msra.mxu0 0.0
    %634 = vmatprep.subr.mxu0 0.0
    %635 = vmatpush1.xpose.msra.mxu0 0.0
    %636 = vmatprep.subr.mxu0 0.0
    %637 = vmatpush1.xpose.msra.mxu0 0.0
    %638 = vmatprep.subr.mxu0 0.0
    %639 = vmatpush1.xpose.msra.mxu0 0.0
    %640 = vmatprep.subr.mxu0 0.0
    %641 = vmatpush1.xpose.msra.mxu0 0.0
    %642 = vmatprep.subr.mxu0 0.0
    %643 = vmatpush1.xpose.msra.mxu0 0.0
    %644 = vmatprep.subr.mxu0 0.0
    %645 = vmatpush1.xpose.msra.mxu0 0.0
    %646 = vmatprep.subr.mxu0 0.0
    %647 = vmatpush1.xpose.msra.mxu0 0.0
    %648 = vmatprep.subr.mxu0 0.0
    %649 = vmatpush1.xpose.msra.mxu0 0.0
    %650 = vmatprep.subr.mxu0 0.0
    %651 = vmatpush1.xpose.msra.mxu0 0.0
    %652 = vmatprep.subr.mxu0 0.0
    %653 = vmatpush1.xpose.msra.mxu0 0.0
    %654 = vmatprep.subr.mxu0 0.0
    %655 = vmatpush1.xpose.msra.mxu0 0.0
    %656 = vmatprep.subr.mxu0 0.0
    %657 = vmatpush1.xpose.msra.mxu0 0.0
    %658 = vmatprep.subr.mxu0 0.0
    %659 = vmatpush1.xpose.msra.mxu0 0.0
    %660 = vmatprep.subr.mxu0 0.0
    %661 = vmatpush1.xpose.msra.mxu0 0.0
    %662 = vmatprep.subr.mxu0 0.0
    %663 = vmatpush1.xpose.msra.mxu0 0.0
    %664 = vmatprep.subr.mxu0 0.0
    %665 = vmatpush1.xpose.msra.mxu0 0.0
    %666 = vmatprep.subr.mxu0 0.0
    %667 = vmatpush1.xpose.msra.mxu0 0.0
    %668 = vmatprep.mubr.f32.mxu0 0.0
    %v669 = vand.u32 %v586, 4294901760
    %v670 = vsub.f32 %v586, %v669
    %v671 = vand.u32 %v670, 4294901760
    %v672 = vsub.f32 %v670, %v671
    %v673 = vand.u32 %v672, 4294901760
    %674 = vmatmul.mubr.f32.gmra.mrb[0].mxu0 %v673
    %v675 = vpop.f32.mrb[0].mxu0
    %v676 = vadd.f32 %v583, %v675
    %v677 = vpop.f32.mrb[0].mxu0
    %678 = vdwg.mxu0
    %679 = vmatprep.subr.mxu0 0.0
    %v680 = vand.u32 %v589, 4294901760
    %v681 = vsub.f32 %v589, %v680
    %v682 = vand.u32 %v681, 4294901760
    %v683 = vsub.f32 %v681, %v682
    %v684 = vand.u32 %v683, 4294901760
    %685 = vmatpush1.xpose.msra.mxu0 %v684
    %686 = vmatprep.subr.mxu0 0.0
    %v687 = vand.u32 %v592, 4294901760
    %v688 = vsub.f32 %v592, %v687
    %v689 = vand.u32 %v688, 4294901760
    %v690 = vsub.f32 %v688, %v689
    %v691 = vand.u32 %v690, 4294901760
    %692 = vmatpush1.xpose.msra.mxu0 %v691
    %693 = vmatprep.subr.mxu0 0.0
    %v694 = vand.u32 %v595, 4294901760
    %v695 = vsub.f32 %v595, %v694
    %v696 = vand.u32 %v695, 4294901760
    %v697 = vsub.f32 %v695, %v696
    %v698 = vand.u32 %v697, 4294901760
    %699 = vmatpush1.xpose.msra.mxu0 %v698
    %700 = vmatprep.subr.mxu0 0.0
    %v701 = vand.u32 %v598, 4294901760
    %v702 = vsub.f32 %v598, %v701
    %v703 = vand.u32 %v702, 4294901760
    %v704 = vsub.f32 %v702, %v703
    %v705 = vand.u32 %v704, 4294901760
    %706 = vmatpush1.xpose.msra.mxu0 %v705
    %707 = vmatprep.subr.mxu0 0.0
    %708 = vmatpush1.xpose.msra.mxu0 0.0
    %709 = vmatprep.subr.mxu0 0.0
    %710 = vmatpush1.xpose.msra.mxu0 0.0
    %711 = vmatprep.subr.mxu0 0.0
    %712 = vmatpush1.xpose.msra.mxu0 0.0
    %713 = vmatprep.subr.mxu0 0.0
    %714 = vmatpush1.xpose.msra.mxu0 0.0
    %715 = vmatprep.subr.mxu0 0.0
    %716 = vmatpush1.xpose.msra.mxu0 0.0
    %717 = vmatprep.subr.mxu0 0.0
    %718 = vmatpush1.xpose.msra.mxu0 0.0
    %719 = vmatprep.subr.mxu0 0.0
    %720 = vmatpush1.xpose.msra.mxu0 0.0
    %721 = vmatprep.subr.mxu0 0.0
    %722 = vmatpush1.xpose.msra.mxu0 0.0
    %723 = vmatprep.subr.mxu0 0.0
    %724 = vmatpush1.xpose.msra.mxu0 0.0
    %725 = vmatprep.subr.mxu0 0.0
    %726 = vmatpush1.xpose.msra.mxu0 0.0
    %727 = vmatprep.subr.mxu0 0.0
    %728 = vmatpush1.xpose.msra.mxu0 0.0
    %729 = vmatprep.subr.mxu0 0.0
    %730 = vmatpush1.xpose.msra.mxu0 0.0
    %731 = vmatprep.subr.mxu0 0.0
    %732 = vmatpush1.xpose.msra.mxu0 0.0
    %733 = vmatprep.subr.mxu0 0.0
    %734 = vmatpush1.xpose.msra.mxu0 0.0
    %735 = vmatprep.subr.mxu0 0.0
    %736 = vmatpush1.xpose.msra.mxu0 0.0
    %737 = vmatprep.subr.mxu0 0.0
    %738 = vmatpush1.xpose.msra.mxu0 0.0
    %739 = vmatprep.subr.mxu0 0.0
    %740 = vmatpush1.xpose.msra.mxu0 0.0
    %741 = vmatprep.subr.mxu0 0.0
    %742 = vmatpush1.xpose.msra.mxu0 0.0
    %743 = vmatprep.subr.mxu0 0.0
    %744 = vmatpush1.xpose.msra.mxu0 0.0
    %745 = vmatprep.subr.mxu0 0.0
    %746 = vmatpush1.xpose.msra.mxu0 0.0
    %747 = vmatprep.subr.mxu0 0.0
    %748 = vmatpush1.xpose.msra.mxu0 0.0
    %749 = vmatprep.subr.mxu0 0.0
    %750 = vmatpush1.xpose.msra.mxu0 0.0
    %751 = vmatprep.subr.mxu0 0.0
    %752 = vmatpush1.xpose.msra.mxu0 0.0
    %753 = vmatprep.subr.mxu0 0.0
    %754 = vmatpush1.xpose.msra.mxu0 0.0
    %755 = vmatprep.subr.mxu0 0.0
    %756 = vmatpush1.xpose.msra.mxu0 0.0
    %757 = vmatprep.subr.mxu0 0.0
    %758 = vmatpush1.xpose.msra.mxu0 0.0
    %759 = vmatprep.subr.mxu0 0.0
    %760 = vmatpush1.xpose.msra.mxu0 0.0
    %761 = vmatprep.subr.mxu0 0.0
    %762 = vmatpush1.xpose.msra.mxu0 0.0
    %763 = vmatprep.mubr.f32.mxu0 0.0
    %v764 = vand.u32 %v586, 4294901760
    %765 = vmatmul.mubr.f32.gmra.mrb[0].mxu0 %v764
    %v766 = vpop.f32.mrb[0].mxu0
    %v767 = vadd.f32 %v676, %v766
    %v768 = vpop.f32.mrb[0].mxu0
    %769 = vdwg.mxu0
    %770 = vmatprep.subr.mxu0 0.0
    %v771 = vand.u32 %v589, 4294901760
    %v772 = vsub.f32 %v589, %v771
    %773 = vmatpush1.xpose.msra.mxu0 %v772
    %774 = vmatprep.subr.mxu0 0.0
    %v775 = vand.u32 %v592, 4294901760
    %v776 = vsub.f32 %v592, %v775
    %777 = vmatpush1.xpose.msra.mxu0 %v776
    %778 = vmatprep.subr.mxu0 0.0
    %v779 = vand.u32 %v595, 4294901760
    %v780 = vsub.f32 %v595, %v779
    %781 = vmatpush1.xpose.msra.mxu0 %v780
    %782 = vmatprep.subr.mxu0 0.0
    %v783 = vand.u32 %v598, 4294901760
    %v784 = vsub.f32 %v598, %v783
    %785 = vmatpush1.xpose.msra.mxu0 %v784
    %786 = vmatprep.subr.mxu0 0.0
    %787 = vmatpush1.xpose.msra.mxu0 0.0
    %788 = vmatprep.subr.mxu0 0.0
    %789 = vmatpush1.xpose.msra.mxu0 0.0
    %790 = vmatprep.subr.mxu0 0.0
    %791 = vmatpush1.xpose.msra.mxu0 0.0
    %792 = vmatprep.subr.mxu0 0.0
    %793 = vmatpush1.xpose.msra.mxu0 0.0
    %794 = vmatprep.subr.mxu0 0.0
    %795 = vmatpush1.xpose.msra.mxu0 0.0
    %796 = vmatprep.subr.mxu0 0.0
    %797 = vmatpush1.xpose.msra.mxu0 0.0
    %798 = vmatprep.subr.mxu0 0.0
    %799 = vmatpush1.xpose.msra.mxu0 0.0
    %800 = vmatprep.subr.mxu0 0.0
    %801 = vmatpush1.xpose.msra.mxu0 0.0
    %802 = vmatprep.subr.mxu0 0.0
    %803 = vmatpush1.xpose.msra.mxu0 0.0
    %804 = vmatprep.subr.mxu0 0.0
    %805 = vmatpush1.xpose.msra.mxu0 0.0
    %806 = vmatprep.subr.mxu0 0.0
    %807 = vmatpush1.xpose.msra.mxu0 0.0
    %808 = vmatprep.subr.mxu0 0.0
    %809 = vmatpush1.xpose.msra.mxu0 0.0
    %810 = vmatprep.subr.mxu0 0.0
    %811 = vmatpush1.xpose.msra.mxu0 0.0
    %812 = vmatprep.subr.mxu0 0.0
    %813 = vmatpush1.xpose.msra.mxu0 0.0
    %814 = vmatprep.subr.mxu0 0.0
    %815 = vmatpush1.xpose.msra.mxu0 0.0
    %816 = vmatprep.subr.mxu0 0.0
    %817 = vmatpush1.xpose.msra.mxu0 0.0
    %818 = vmatprep.subr.mxu0 0.0
    %819 = vmatpush1.xpose.msra.mxu0 0.0
    %820 = vmatprep.subr.mxu0 0.0
    %821 = vmatpush1.xpose.msra.mxu0 0.0
    %822 = vmatprep.subr.mxu0 0.0
    %823 = vmatpush1.xpose.msra.mxu0 0.0
    %824 = vmatprep.subr.mxu0 0.0
    %825 = vmatpush1.xpose.msra.mxu0 0.0
    %826 = vmatprep.subr.mxu0 0.0
    %827 = vmatpush1.xpose.msra.mxu0 0.0
    %828 = vmatprep.subr.mxu0 0.0
    %829 = vmatpush1.xpose.msra.mxu0 0.0
    %830 = vmatprep.subr.mxu0 0.0
    %831 = vmatpush1.xpose.msra.mxu0 0.0
    %832 = vmatprep.subr.mxu0 0.0
    %833 = vmatpush1.xpose.msra.mxu0 0.0
    %834 = vmatprep.subr.mxu0 0.0
    %835 = vmatpush1.xpose.msra.mxu0 0.0
    %836 = vmatprep.subr.mxu0 0.0
    %837 = vmatpush1.xpose.msra.mxu0 0.0
    %838 = vmatprep.subr.mxu0 0.0
    %839 = vmatpush1.xpose.msra.mxu0 0.0
    %840 = vmatprep.subr.mxu0 0.0
    %841 = vmatpush1.xpose.msra.mxu0 0.0
    %842 = vmatprep.mubr.f32.mxu0 0.0
    %v843 = vand.u32 %v586, 4294901760
    %v844 = vsub.f32 %v586, %v843
    %845 = vmatmul.mubr.f32.gmra.mrb[0].mxu0 %v844
    %v846 = vpop.f32.mrb[0].mxu0
    %v847 = vadd.f32 %v767, %v846
    %v848 = vpop.f32.mrb[0].mxu0
    %849 = vdwg.mxu0
    %850 = vmatprep.subr.mxu0 0.0
    %v851 = vand.u32 %v589, 4294901760
    %852 = vmatpush1.xpose.msra.mxu0 %v851
    %853 = vmatprep.subr.mxu0 0.0
    %v854 = vand.u32 %v592, 4294901760
    %855 = vmatpush1.xpose.msra.mxu0 %v854
    %856 = vmatprep.subr.mxu0 0.0
    %v857 = vand.u32 %v595, 4294901760
    %858 = vmatpush1.xpose.msra.mxu0 %v857
    %859 = vmatprep.subr.mxu0 0.0
    %v860 = vand.u32 %v598, 4294901760
    %861 = vmatpush1.xpose.msra.mxu0 %v860
    %862 = vmatprep.subr.mxu0 0.0
    %863 = vmatpush1.xpose.msra.mxu0 0.0
    %864 = vmatprep.subr.mxu0 0.0
    %865 = vmatpush1.xpose.msra.mxu0 0.0
    %866 = vmatprep.subr.mxu0 0.0
    %867 = vmatpush1.xpose.msra.mxu0 0.0
    %868 = vmatprep.subr.mxu0 0.0
    %869 = vmatpush1.xpose.msra.mxu0 0.0
    %870 = vmatprep.subr.mxu0 0.0
    %871 = vmatpush1.xpose.msra.mxu0 0.0
    %872 = vmatprep.subr.mxu0 0.0
    %873 = vmatpush1.xpose.msra.mxu0 0.0
    %874 = vmatprep.subr.mxu0 0.0
    %875 = vmatpush1.xpose.msra.mxu0 0.0
    %876 = vmatprep.subr.mxu0 0.0
    %877 = vmatpush1.xpose.msra.mxu0 0.0
    %878 = vmatprep.subr.mxu0 0.0
    %879 = vmatpush1.xpose.msra.mxu0 0.0
    %880 = vmatprep.subr.mxu0 0.0
    %881 = vmatpush1.xpose.msra.mxu0 0.0
    %882 = vmatprep.subr.mxu0 0.0
    %883 = vmatpush1.xpose.msra.mxu0 0.0
    %884 = vmatprep.subr.mxu0 0.0
    %885 = vmatpush1.xpose.msra.mxu0 0.0
    %886 = vmatprep.subr.mxu0 0.0
    %887 = vmatpush1.xpose.msra.mxu0 0.0
    %888 = vmatprep.subr.mxu0 0.0
    %889 = vmatpush1.xpose.msra.mxu0 0.0
    %890 = vmatprep.subr.mxu0 0.0
    %891 = vmatpush1.xpose.msra.mxu0 0.0
    %892 = vmatprep.subr.mxu0 0.0
    %893 = vmatpush1.xpose.msra.mxu0 0.0
    %894 = vmatprep.subr.mxu0 0.0
    %895 = vmatpush1.xpose.msra.mxu0 0.0
    %896 = vmatprep.subr.mxu0 0.0
    %897 = vmatpush1.xpose.msra.mxu0 0.0
    %898 = vmatprep.subr.mxu0 0.0
    %899 = vmatpush1.xpose.msra.mxu0 0.0
    %900 = vmatprep.subr.mxu0 0.0
    %901 = vmatpush1.xpose.msra.mxu0 0.0
    %902 = vmatprep.subr.mxu0 0.0
    %903 = vmatpush1.xpose.msra.mxu0 0.0
    %904 = vmatprep.subr.mxu0 0.0
    %905 = vmatpush1.xpose.msra.mxu0 0.0
    %906 = vmatprep.subr.mxu0 0.0
    %907 = vmatpush1.xpose.msra.mxu0 0.0
    %908 = vmatprep.subr.mxu0 0.0
    %909 = vmatpush1.xpose.msra.mxu0 0.0
    %910 = vmatprep.subr.mxu0 0.0
    %911 = vmatpush1.xpose.msra.mxu0 0.0
    %912 = vmatprep.subr.mxu0 0.0
    %913 = vmatpush1.xpose.msra.mxu0 0.0
    %914 = vmatprep.subr.mxu0 0.0
    %915 = vmatpush1.xpose.msra.mxu0 0.0
    %916 = vmatprep.subr.mxu0 0.0
    %917 = vmatpush1.xpose.msra.mxu0 0.0
    %918 = vmatprep.mubr.f32.mxu0 0.0
    %v919 = vand.u32 %v586, 4294901760
    %v920 = vsub.f32 %v586, %v919
    %v921 = vand.u32 %v920, 4294901760
    %922 = vmatmul.mubr.f32.gmra.mrb[0].mxu0 %v921
    %v923 = vpop.f32.mrb[0].mxu0
    %v924 = vadd.f32 %v847, %v923
    %v925 = vpop.f32.mrb[0].mxu0
    %926 = vdwg.mxu0
    %927 = vmatprep.subr.mxu0 0.0
    %v928 = vand.u32 %v589, 4294901760
    %v929 = vsub.f32 %v589, %v928
    %v930 = vand.u32 %v929, 4294901760
    %931 = vmatpush1.xpose.msra.mxu0 %v930
    %932 = vmatprep.subr.mxu0 0.0
    %v933 = vand.u32 %v592, 4294901760
    %v934 = vsub.f32 %v592, %v933
    %v935 = vand.u32 %v934, 4294901760
    %936 = vmatpush1.xpose.msra.mxu0 %v935
    %937 = vmatprep.subr.mxu0 0.0
    %v938 = vand.u32 %v595, 4294901760
    %v939 = vsub.f32 %v595, %v938
    %v940 = vand.u32 %v939, 4294901760
    %941 = vmatpush1.xpose.msra.mxu0 %v940
    %942 = vmatprep.subr.mxu0 0.0
    %v943 = vand.u32 %v598, 4294901760
    %v944 = vsub.f32 %v598, %v943
    %v945 = vand.u32 %v944, 4294901760
    %946 = vmatpush1.xpose.msra.mxu0 %v945
    %947 = vmatprep.subr.mxu0 0.0
    %948 = vmatpush1.xpose.msra.mxu0 0.0
    %949 = vmatprep.subr.mxu0 0.0
    %950 = vmatpush1.xpose.msra.mxu0 0.0
    %951 = vmatprep.subr.mxu0 0.0
    %952 = vmatpush1.xpose.msra.mxu0 0.0
    %953 = vmatprep.subr.mxu0 0.0
    %954 = vmatpush1.xpose.msra.mxu0 0.0
    %955 = vmatprep.subr.mxu0 0.0
    %956 = vmatpush1.xpose.msra.mxu0 0.0
    %957 = vmatprep.subr.mxu0 0.0
    %958 = vmatpush1.xpose.msra.mxu0 0.0
    %959 = vmatprep.subr.mxu0 0.0
    %960 = vmatpush1.xpose.msra.mxu0 0.0
    %961 = vmatprep.subr.mxu0 0.0
    %962 = vmatpush1.xpose.msra.mxu0 0.0
    %963 = vmatprep.subr.mxu0 0.0
    %964 = vmatpush1.xpose.msra.mxu0 0.0
    %965 = vmatprep.subr.mxu0 0.0
    %966 = vmatpush1.xpose.msra.mxu0 0.0
    %967 = vmatprep.subr.mxu0 0.0
    %968 = vmatpush1.xpose.msra.mxu0 0.0
    %969 = vmatprep.subr.mxu0 0.0
    %970 = vmatpush1.xpose.msra.mxu0 0.0
    %971 = vmatprep.subr.mxu0 0.0
    %972 = vmatpush1.xpose.msra.mxu0 0.0
    %973 = vmatprep.subr.mxu0 0.0
    %974 = vmatpush1.xpose.msra.mxu0 0.0
    %975 = vmatprep.subr.mxu0 0.0
    %976 = vmatpush1.xpose.msra.mxu0 0.0
    %977 = vmatprep.subr.mxu0 0.0
    %978 = vmatpush1.xpose.msra.mxu0 0.0
    %979 = vmatprep.subr.mxu0 0.0
    %980 = vmatpush1.xpose.msra.mxu0 0.0
    %981 = vmatprep.subr.mxu0 0.0
    %982 = vmatpush1.xpose.msra.mxu0 0.0
    %983 = vmatprep.subr.mxu0 0.0
    %984 = vmatpush1.xpose.msra.mxu0 0.0
    %985 = vmatprep.subr.mxu0 0.0
    %986 = vmatpush1.xpose.msra.mxu0 0.0
    %987 = vmatprep.subr.mxu0 0.0
    %988 = vmatpush1.xpose.msra.mxu0 0.0
    %989 = vmatprep.subr.mxu0 0.0
    %990 = vmatpush1.xpose.msra.mxu0 0.0
    %991 = vmatprep.subr.mxu0 0.0
    %992 = vmatpush1.xpose.msra.mxu0 0.0
    %993 = vmatprep.subr.mxu0 0.0
    %994 = vmatpush1.xpose.msra.mxu0 0.0
    %995 = vmatprep.subr.mxu0 0.0
    %996 = vmatpush1.xpose.msra.mxu0 0.0
    %997 = vmatprep.subr.mxu0 0.0
    %998 = vmatpush1.xpose.msra.mxu0 0.0
    %999 = vmatprep.subr.mxu0 0.0
    %1000 = vmatpush1.xpose.msra.mxu0 0.0
    %1001 = vmatprep.subr.mxu0 0.0
    %1002 = vmatpush1.xpose.msra.mxu0 0.0
    %1003 = vmatprep.mubr.f32.mxu0 0.0
    %v1004 = vand.u32 %v586, 4294901760
    %1005 = vmatmul.mubr.f32.gmra.mrb[0].mxu0 %v1004
    %v1006 = vpop.f32.mrb[0].mxu0
    %v1007 = vadd.f32 %v924, %v1006
    %v1008 = vpop.f32.mrb[0].mxu0
    %1009 = vdwg.mxu0
    %1010 = vmatprep.subr.mxu0 0.0
    %v1011 = vand.u32 %v589, 4294901760
    %1012 = vmatpush1.xpose.msra.mxu0 %v1011
    %1013 = vmatprep.subr.mxu0 0.0
    %v1014 = vand.u32 %v592, 4294901760
    %1015 = vmatpush1.xpose.msra.mxu0 %v1014
    %1016 = vmatprep.subr.mxu0 0.0
    %v1017 = vand.u32 %v595, 4294901760
    %1018 = vmatpush1.xpose.msra.mxu0 %v1017
    %1019 = vmatprep.subr.mxu0 0.0
    %v1020 = vand.u32 %v598, 4294901760
    %1021 = vmatpush1.xpose.msra.mxu0 %v1020
    %1022 = vmatprep.subr.mxu0 0.0
    %1023 = vmatpush1.xpose.msra.mxu0 0.0
    %1024 = vmatprep.subr.mxu0 0.0
    %1025 = vmatpush1.xpose.msra.mxu0 0.0
    %1026 = vmatprep.subr.mxu0 0.0
    %1027 = vmatpush1.xpose.msra.mxu0 0.0
    %1028 = vmatprep.subr.mxu0 0.0
    %1029 = vmatpush1.xpose.msra.mxu0 0.0
    %1030 = vmatprep.subr.mxu0 0.0
    %1031 = vmatpush1.xpose.msra.mxu0 0.0
    %1032 = vmatprep.subr.mxu0 0.0
    %1033 = vmatpush1.xpose.msra.mxu0 0.0
    %1034 = vmatprep.subr.mxu0 0.0
    %1035 = vmatpush1.xpose.msra.mxu0 0.0
    %1036 = vmatprep.subr.mxu0 0.0
    %1037 = vmatpush1.xpose.msra.mxu0 0.0
    %1038 = vmatprep.subr.mxu0 0.0
    %1039 = vmatpush1.xpose.msra.mxu0 0.0
    %1040 = vmatprep.subr.mxu0 0.0
    %1041 = vmatpush1.xpose.msra.mxu0 0.0
    %1042 = vmatprep.subr.mxu0 0.0
    %1043 = vmatpush1.xpose.msra.mxu0 0.0
    %1044 = vmatprep.subr.mxu0 0.0
    %1045 = vmatpush1.xpose.msra.mxu0 0.0
    %1046 = vmatprep.subr.mxu0 0.0
    %1047 = vmatpush1.xpose.msra.mxu0 0.0
    %1048 = vmatprep.subr.mxu0 0.0
    %1049 = vmatpush1.xpose.msra.mxu0 0.0
    %1050 = vmatprep.subr.mxu0 0.0
    %1051 = vmatpush1.xpose.msra.mxu0 0.0
    %1052 = vmatprep.subr.mxu0 0.0
    %1053 = vmatpush1.xpose.msra.mxu0 0.0
    %1054 = vmatprep.subr.mxu0 0.0
    %1055 = vmatpush1.xpose.msra.mxu0 0.0
    %1056 = vmatprep.subr.mxu0 0.0
    %1057 = vmatpush1.xpose.msra.mxu0 0.0
    %1058 = vmatprep.subr.mxu0 0.0
    %1059 = vmatpush1.xpose.msra.mxu0 0.0
    %1060 = vmatprep.subr.mxu0 0.0
    %1061 = vmatpush1.xpose.msra.mxu0 0.0
    %1062 = vmatprep.subr.mxu0 0.0
    %1063 = vmatpush1.xpose.msra.mxu0 0.0
    %1064 = vmatprep.subr.mxu0 0.0
    %1065 = vmatpush1.xpose.msra.mxu0 0.0
    %1066 = vmatprep.subr.mxu0 0.0
    %1067 = vmatpush1.xpose.msra.mxu0 0.0
    %1068 = vmatprep.subr.mxu0 0.0
    %1069 = vmatpush1.xpose.msra.mxu0 0.0
    %1070 = vmatprep.subr.mxu0 0.0
    %1071 = vmatpush1.xpose.msra.mxu0 0.0
    %1072 = vmatprep.subr.mxu0 0.0
    %1073 = vmatpush1.xpose.msra.mxu0 0.0
    %1074 = vmatprep.subr.mxu0 0.0
    %1075 = vmatpush1.xpose.msra.mxu0 0.0
    %1076 = vmatprep.subr.mxu0 0.0
    %1077 = vmatpush1.xpose.msra.mxu0 0.0
    %1078 = vmatprep.mubr.f32.mxu0 0.0
    %v1079 = vand.u32 %v586, 4294901760
    %1080 = vmatmul.mubr.f32.gmra.mrb[0].mxu0 %v1079
    %v1081 = vpop.f32.mrb[0].mxu0
    %v1082 = vadd.f32 %v1007, %v1081
    %v1083 = vpop.f32.mrb[0].mxu0
    %1084 = vdwg.mxu0
    %v1085 = vtanh.pop %v1082
    %s1086 = scalar_lea.vmem [#allocation7], 32
    %v1087 = vld [vmem:[%s1086] sm:$0xff]
    %v1088 = vld [vmem:[%s1086 + $0x8] sm:$0xff]
    %v1089 = vld [vmem:[%s1086 + $0x10] sm:$0xff]
    %v1090 = vld [vmem:[%s1086 + $0x18] sm:$0xff]
    %s1091 = scalar_lea.vmem %s4, 1
    %v1092 = vld [vmem:[%s1091] sm:$0x1]
    %v1094 = vlaneseq
    %v1095 = vshrl.u32 %v1094, 7
    %v1096 = vsub.s32 0, %v1095
    %v1097 = vrot.slane %v1092, %v1096
    %v1100 = vsel %vm72, %v1085, 0
    %v1103 = vsel %vm72, %v1087, 0
    %v1106 = vsel %vm72, %v1088, 0
    %v1109 = vsel %vm72, %v1089, 0
    %v1112 = vsel %vm72, %v1090, 0
    %1114 = vmatprep.subr.mxu0 0.0
    %v1115 = vand.u32 %v1103, 4294901760
    %1116 = vmatpush1.xpose.msra.mxu0 %v1115
    %1117 = vmatprep.subr.mxu0 0.0
    %v1118 = vand.u32 %v1106, 4294901760
    %1119 = vmatpush1.xpose.msra.mxu0 %v1118
    %1120 = vmatprep.subr.mxu0 0.0
    %v1121 = vand.u32 %v1109, 4294901760
    %1122 = vmatpush1.xpose.msra.mxu0 %v1121
    %1123 = vmatprep.subr.mxu0 0.0
    %v1124 = vand.u32 %v1112, 4294901760
    %1125 = vmatpush1.xpose.msra.mxu0 %v1124
    %1126 = vmatprep.subr.mxu0 0.0
    %1127 = vmatpush1.xpose.msra.mxu0 0.0
    %1128 = vmatprep.subr.mxu0 0.0
    %1129 = vmatpush1.xpose.msra.mxu0 0.0
    %1130 = vmatprep.subr.mxu0 0.0
    %1131 = vmatpush1.xpose.msra.mxu0 0.0
    %1132 = vmatprep.subr.mxu0 0.0
    %1133 = vmatpush1.xpose.msra.mxu0 0.0
    %1134 = vmatprep.subr.mxu0 0.0
    %1135 = vmatpush1.xpose.msra.mxu0 0.0
    %1136 = vmatprep.subr.mxu0 0.0
    %1137 = vmatpush1.xpose.msra.mxu0 0.0
    %1138 = vmatprep.subr.mxu0 0.0
    %1139 = vmatpush1.xpose.msra.mxu0 0.0
    %1140 = vmatprep.subr.mxu0 0.0
    %1141 = vmatpush1.xpose.msra.mxu0 0.0
    %1142 = vmatprep.subr.mxu0 0.0
    %1143 = vmatpush1.xpose.msra.mxu0 0.0
    %1144 = vmatprep.subr.mxu0 0.0
    %1145 = vmatpush1.xpose.msra.mxu0 0.0
    %1146 = vmatprep.subr.mxu0 0.0
    %1147 = vmatpush1.xpose.msra.mxu0 0.0
    %1148 = vmatprep.subr.mxu0 0.0
    %1149 = vmatpush1.xpose.msra.mxu0 0.0
    %1150 = vmatprep.subr.mxu0 0.0
    %1151 = vmatpush1.xpose.msra.mxu0 0.0
    %1152 = vmatprep.subr.mxu0 0.0
    %1153 = vmatpush1.xpose.msra.mxu0 0.0
    %1154 = vmatprep.subr.mxu0 0.0
    %1155 = vmatpush1.xpose.msra.mxu0 0.0
    %1156 = vmatprep.subr.mxu0 0.0
    %1157 = vmatpush1.xpose.msra.mxu0 0.0
    %1158 = vmatprep.subr.mxu0 0.0
    %1159 = vmatpush1.xpose.msra.mxu0 0.0
    %1160 = vmatprep.subr.mxu0 0.0
    %1161 = vmatpush1.xpose.msra.mxu0 0.0
    %1162 = vmatprep.subr.mxu0 0.0
    %1163 = vmatpush1.xpose.msra.mxu0 0.0
    %1164 = vmatprep.subr.mxu0 0.0
    %1165 = vmatpush1.xpose.msra.mxu0 0.0
    %1166 = vmatprep.subr.mxu0 0.0
    %1167 = vmatpush1.xpose.msra.mxu0 0.0
    %1168 = vmatprep.subr.mxu0 0.0
    %1169 = vmatpush1.xpose.msra.mxu0 0.0
    %1170 = vmatprep.subr.mxu0 0.0
    %1171 = vmatpush1.xpose.msra.mxu0 0.0
    %1172 = vmatprep.subr.mxu0 0.0
    %1173 = vmatpush1.xpose.msra.mxu0 0.0
    %1174 = vmatprep.subr.mxu0 0.0
    %1175 = vmatpush1.xpose.msra.mxu0 0.0
    %1176 = vmatprep.subr.mxu0 0.0
    %1177 = vmatpush1.xpose.msra.mxu0 0.0
    %1178 = vmatprep.subr.mxu0 0.0
    %1179 = vmatpush1.xpose.msra.mxu0 0.0
    %1180 = vmatprep.subr.mxu0 0.0
    %1181 = vmatpush1.xpose.msra.mxu0 0.0
    %1182 = vmatprep.mubr.f32.mxu0 0.0
    %v1183 = vand.u32 %v1100, 4294901760
    %v1184 = vsub.f32 %v1100, %v1183
    %v1185 = vand.u32 %v1184, 4294901760
    %v1186 = vsub.f32 %v1184, %v1185
    %v1187 = vand.u32 %v1186, 4294901760
    %1188 = vmatmul.mubr.f32.gmra.mrb[0].mxu0 %v1187
    %v1189 = vpop.f32.mrb[0].mxu0
    %v1190 = vadd.f32 %v1097, %v1189
    %v1191 = vpop.f32.mrb[0].mxu0
    %1192 = vdwg.mxu0
    %1193 = vmatprep.subr.mxu0 0.0
    %v1194 = vand.u32 %v1103, 4294901760
    %v1195 = vsub.f32 %v1103, %v1194
    %v1196 = vand.u32 %v1195, 4294901760
    %v1197 = vsub.f32 %v1195, %v1196
    %v1198 = vand.u32 %v1197, 4294901760
    %1199 = vmatpush1.xpose.msra.mxu0 %v1198
    %1200 = vmatprep.subr.mxu0 0.0
    %v1201 = vand.u32 %v1106, 4294901760
    %v1202 = vsub.f32 %v1106, %v1201
    %v1203 = vand.u32 %v1202, 4294901760
    %v1204 = vsub.f32 %v1202, %v1203
    %v1205 = vand.u32 %v1204, 4294901760
    %1206 = vmatpush1.xpose.msra.mxu0 %v1205
    %1207 = vmatprep.subr.mxu0 0.0
    %v1208 = vand.u32 %v1109, 4294901760
    %v1209 = vsub.f32 %v1109, %v1208
    %v1210 = vand.u32 %v1209, 4294901760
    %v1211 = vsub.f32 %v1209, %v1210
    %v1212 = vand.u32 %v1211, 4294901760
    %1213 = vmatpush1.xpose.msra.mxu0 %v1212
    %1214 = vmatprep.subr.mxu0 0.0
    %v1215 = vand.u32 %v1112, 4294901760
    %v1216 = vsub.f32 %v1112, %v1215
    %v1217 = vand.u32 %v1216, 4294901760
    %v1218 = vsub.f32 %v1216, %v1217
    %v1219 = vand.u32 %v1218, 4294901760
    %1220 = vmatpush1.xpose.msra.mxu0 %v1219
    %1221 = vmatprep.subr.mxu0 0.0
    %1222 = vmatpush1.xpose.msra.mxu0 0.0
    %1223 = vmatprep.subr.mxu0 0.0
    %1224 = vmatpush1.xpose.msra.mxu0 0.0
    %1225 = vmatprep.subr.mxu0 0.0
    %1226 = vmatpush1.xpose.msra.mxu0 0.0
    %1227 = vmatprep.subr.mxu0 0.0
    %1228 = vmatpush1.xpose.msra.mxu0 0.0
    %1229 = vmatprep.subr.mxu0 0.0
    %1230 = vmatpush1.xpose.msra.mxu0 0.0
    %1231 = vmatprep.subr.mxu0 0.0
    %1232 = vmatpush1.xpose.msra.mxu0 0.0
    %1233 = vmatprep.subr.mxu0 0.0
    %1234 = vmatpush1.xpose.msra.mxu0 0.0
    %1235 = vmatprep.subr.mxu0 0.0
    %1236 = vmatpush1.xpose.msra.mxu0 0.0
    %1237 = vmatprep.subr.mxu0 0.0
    %1238 = vmatpush1.xpose.msra.mxu0 0.0
    %1239 = vmatprep.subr.mxu0 0.0
    %1240 = vmatpush1.xpose.msra.mxu0 0.0
    %1241 = vmatprep.subr.mxu0 0.0
    %1242 = vmatpush1.xpose.msra.mxu0 0.0
    %1243 = vmatprep.subr.mxu0 0.0
    %1244 = vmatpush1.xpose.msra.mxu0 0.0
    %1245 = vmatprep.subr.mxu0 0.0
    %1246 = vmatpush1.xpose.msra.mxu0 0.0
    %1247 = vmatprep.subr.mxu0 0.0
    %1248 = vmatpush1.xpose.msra.mxu0 0.0
    %1249 = vmatprep.subr.mxu0 0.0
    %1250 = vmatpush1.xpose.msra.mxu0 0.0
    %1251 = vmatprep.subr.mxu0 0.0
    %1252 = vmatpush1.xpose.msra.mxu0 0.0
    %1253 = vmatprep.subr.mxu0 0.0
    %1254 = vmatpush1.xpose.msra.mxu0 0.0
    %1255 = vmatprep.subr.mxu0 0.0
    %1256 = vmatpush1.xpose.msra.mxu0 0.0
    %1257 = vmatprep.subr.mxu0 0.0
    %1258 = vmatpush1.xpose.msra.mxu0 0.0
    %1259 = vmatprep.subr.mxu0 0.0
    %1260 = vmatpush1.xpose.msra.mxu0 0.0
    %1261 = vmatprep.subr.mxu0 0.0
    %1262 = vmatpush1.xpose.msra.mxu0 0.0
    %1263 = vmatprep.subr.mxu0 0.0
    %1264 = vmatpush1.xpose.msra.mxu0 0.0
    %1265 = vmatprep.subr.mxu0 0.0
    %1266 = vmatpush1.xpose.msra.mxu0 0.0
    %1267 = vmatprep.subr.mxu0 0.0
    %1268 = vmatpush1.xpose.msra.mxu0 0.0
    %1269 = vmatprep.subr.mxu0 0.0
    %1270 = vmatpush1.xpose.msra.mxu0 0.0
    %1271 = vmatprep.subr.mxu0 0.0
    %1272 = vmatpush1.xpose.msra.mxu0 0.0
    %1273 = vmatprep.subr.mxu0 0.0
    %1274 = vmatpush1.xpose.msra.mxu0 0.0
    %1275 = vmatprep.subr.mxu0 0.0
    %1276 = vmatpush1.xpose.msra.mxu0 0.0
    %1277 = vmatprep.mubr.f32.mxu0 0.0
    %v1278 = vand.u32 %v1100, 4294901760
    %1279 = vmatmul.mubr.f32.gmra.mrb[0].mxu0 %v1278
    %v1280 = vpop.f32.mrb[0].mxu0
    %v1281 = vadd.f32 %v1190, %v1280
    %v1282 = vpop.f32.mrb[0].mxu0
    %1283 = vdwg.mxu0
    %1284 = vmatprep.subr.mxu0 0.0
    %v1285 = vand.u32 %v1103, 4294901760
    %v1286 = vsub.f32 %v1103, %v1285
    %1287 = vmatpush1.xpose.msra.mxu0 %v1286
    %1288 = vmatprep.subr.mxu0 0.0
    %v1289 = vand.u32 %v1106, 4294901760
    %v1290 = vsub.f32 %v1106, %v1289
    %1291 = vmatpush1.xpose.msra.mxu0 %v1290
    %1292 = vmatprep.subr.mxu0 0.0
    %v1293 = vand.u32 %v1109, 4294901760
    %v1294 = vsub.f32 %v1109, %v1293
    %1295 = vmatpush1.xpose.msra.mxu0 %v1294
    %1296 = vmatprep.subr.mxu0 0.0
    %v1297 = vand.u32 %v1112, 4294901760
    %v1298 = vsub.f32 %v1112, %v1297
    %1299 = vmatpush1.xpose.msra.mxu0 %v1298
    %1300 = vmatprep.subr.mxu0 0.0
    %1301 = vmatpush1.xpose.msra.mxu0 0.0
    %1302 = vmatprep.subr.mxu0 0.0
    %1303 = vmatpush1.xpose.msra.mxu0 0.0
    %1304 = vmatprep.subr.mxu0 0.0
    %1305 = vmatpush1.xpose.msra.mxu0 0.0
    %1306 = vmatprep.subr.mxu0 0.0
    %1307 = vmatpush1.xpose.msra.mxu0 0.0
    %1308 = vmatprep.subr.mxu0 0.0
    %1309 = vmatpush1.xpose.msra.mxu0 0.0
    %1310 = vmatprep.subr.mxu0 0.0
    %1311 = vmatpush1.xpose.msra.mxu0 0.0
    %1312 = vmatprep.subr.mxu0 0.0
    %1313 = vmatpush1.xpose.msra.mxu0 0.0
    %1314 = vmatprep.subr.mxu0 0.0
    %1315 = vmatpush1.xpose.msra.mxu0 0.0
    %1316 = vmatprep.subr.mxu0 0.0
    %1317 = vmatpush1.xpose.msra.mxu0 0.0
    %1318 = vmatprep.subr.mxu0 0.0
    %1319 = vmatpush1.xpose.msra.mxu0 0.0
    %1320 = vmatprep.subr.mxu0 0.0
    %1321 = vmatpush1.xpose.msra.mxu0 0.0
    %1322 = vmatprep.subr.mxu0 0.0
    %1323 = vmatpush1.xpose.msra.mxu0 0.0
    %1324 = vmatprep.subr.mxu0 0.0
    %1325 = vmatpush1.xpose.msra.mxu0 0.0
    %1326 = vmatprep.subr.mxu0 0.0
    %1327 = vmatpush1.xpose.msra.mxu0 0.0
    %1328 = vmatprep.subr.mxu0 0.0
    %1329 = vmatpush1.xpose.msra.mxu0 0.0
    %1330 = vmatprep.subr.mxu0 0.0
    %1331 = vmatpush1.xpose.msra.mxu0 0.0
    %1332 = vmatprep.subr.mxu0 0.0
    %1333 = vmatpush1.xpose.msra.mxu0 0.0
    %1334 = vmatprep.subr.mxu0 0.0
    %1335 = vmatpush1.xpose.msra.mxu0 0.0
    %1336 = vmatprep.subr.mxu0 0.0
    %1337 = vmatpush1.xpose.msra.mxu0 0.0
    %1338 = vmatprep.subr.mxu0 0.0
    %1339 = vmatpush1.xpose.msra.mxu0 0.0
    %1340 = vmatprep.subr.mxu0 0.0
    %1341 = vmatpush1.xpose.msra.mxu0 0.0
    %1342 = vmatprep.subr.mxu0 0.0
    %1343 = vmatpush1.xpose.msra.mxu0 0.0
    %1344 = vmatprep.subr.mxu0 0.0
    %1345 = vmatpush1.xpose.msra.mxu0 0.0
    %1346 = vmatprep.subr.mxu0 0.0
    %1347 = vmatpush1.xpose.msra.mxu0 0.0
    %1348 = vmatprep.subr.mxu0 0.0
    %1349 = vmatpush1.xpose.msra.mxu0 0.0
    %1350 = vmatprep.subr.mxu0 0.0
    %1351 = vmatpush1.xpose.msra.mxu0 0.0
    %1352 = vmatprep.subr.mxu0 0.0
    %1353 = vmatpush1.xpose.msra.mxu0 0.0
    %1354 = vmatprep.subr.mxu0 0.0
    %1355 = vmatpush1.xpose.msra.mxu0 0.0
    %1356 = vmatprep.mubr.f32.mxu0 0.0
    %v1357 = vand.u32 %v1100, 4294901760
    %v1358 = vsub.f32 %v1100, %v1357
    %1359 = vmatmul.mubr.f32.gmra.mrb[0].mxu0 %v1358
    %v1360 = vpop.f32.mrb[0].mxu0
    %v1361 = vadd.f32 %v1281, %v1360
    %v1362 = vpop.f32.mrb[0].mxu0
    %1363 = vdwg.mxu0
    %1364 = vmatprep.subr.mxu0 0.0
    %v1365 = vand.u32 %v1103, 4294901760
    %1366 = vmatpush1.xpose.msra.mxu0 %v1365
    %1367 = vmatprep.subr.mxu0 0.0
    %v1368 = vand.u32 %v1106, 4294901760
    %1369 = vmatpush1.xpose.msra.mxu0 %v1368
    %1370 = vmatprep.subr.mxu0 0.0
    %v1371 = vand.u32 %v1109, 4294901760
    %1372 = vmatpush1.xpose.msra.mxu0 %v1371
    %1373 = vmatprep.subr.mxu0 0.0
    %v1374 = vand.u32 %v1112, 4294901760
    %1375 = vmatpush1.xpose.msra.mxu0 %v1374
    %1376 = vmatprep.subr.mxu0 0.0
    %1377 = vmatpush1.xpose.msra.mxu0 0.0
    %1378 = vmatprep.subr.mxu0 0.0
    %1379 = vmatpush1.xpose.msra.mxu0 0.0
    %1380 = vmatprep.subr.mxu0 0.0
    %1381 = vmatpush1.xpose.msra.mxu0 0.0
    %1382 = vmatprep.subr.mxu0 0.0
    %1383 = vmatpush1.xpose.msra.mxu0 0.0
    %1384 = vmatprep.subr.mxu0 0.0
    %1385 = vmatpush1.xpose.msra.mxu0 0.0
    %1386 = vmatprep.subr.mxu0 0.0
    %1387 = vmatpush1.xpose.msra.mxu0 0.0
    %1388 = vmatprep.subr.mxu0 0.0
    %1389 = vmatpush1.xpose.msra.mxu0 0.0
    %1390 = vmatprep.subr.mxu0 0.0
    %1391 = vmatpush1.xpose.msra.mxu0 0.0
    %1392 = vmatprep.subr.mxu0 0.0
    %1393 = vmatpush1.xpose.msra.mxu0 0.0
    %1394 = vmatprep.subr.mxu0 0.0
    %1395 = vmatpush1.xpose.msra.mxu0 0.0
    %1396 = vmatprep.subr.mxu0 0.0
    %1397 = vmatpush1.xpose.msra.mxu0 0.0
    %1398 = vmatprep.subr.mxu0 0.0
    %1399 = vmatpush1.xpose.msra.mxu0 0.0
    %1400 = vmatprep.subr.mxu0 0.0
    %1401 = vmatpush1.xpose.msra.mxu0 0.0
    %1402 = vmatprep.subr.mxu0 0.0
    %1403 = vmatpush1.xpose.msra.mxu0 0.0
    %1404 = vmatprep.subr.mxu0 0.0
    %1405 = vmatpush1.xpose.msra.mxu0 0.0
    %1406 = vmatprep.subr.mxu0 0.0
    %1407 = vmatpush1.xpose.msra.mxu0 0.0
    %1408 = vmatprep.subr.mxu0 0.0
    %1409 = vmatpush1.xpose.msra.mxu0 0.0
    %1410 = vmatprep.subr.mxu0 0.0
    %1411 = vmatpush1.xpose.msra.mxu0 0.0
    %1412 = vmatprep.subr.mxu0 0.0
    %1413 = vmatpush1.xpose.msra.mxu0 0.0
    %1414 = vmatprep.subr.mxu0 0.0
    %1415 = vmatpush1.xpose.msra.mxu0 0.0
    %1416 = vmatprep.subr.mxu0 0.0
    %1417 = vmatpush1.xpose.msra.mxu0 0.0
    %1418 = vmatprep.subr.mxu0 0.0
    %1419 = vmatpush1.xpose.msra.mxu0 0.0
    %1420 = vmatprep.subr.mxu0 0.0
    %1421 = vmatpush1.xpose.msra.mxu0 0.0
    %1422 = vmatprep.subr.mxu0 0.0
    %1423 = vmatpush1.xpose.msra.mxu0 0.0
    %1424 = vmatprep.subr.mxu0 0.0
    %1425 = vmatpush1.xpose.msra.mxu0 0.0
    %1426 = vmatprep.subr.mxu0 0.0
    %1427 = vmatpush1.xpose.msra.mxu0 0.0
    %1428 = vmatprep.subr.mxu0 0.0
    %1429 = vmatpush1.xpose.msra.mxu0 0.0
    %1430 = vmatprep.subr.mxu0 0.0
    %1431 = vmatpush1.xpose.msra.mxu0 0.0
    %1432 = vmatprep.mubr.f32.mxu0 0.0
    %v1433 = vand.u32 %v1100, 4294901760
    %v1434 = vsub.f32 %v1100, %v1433
    %v1435 = vand.u32 %v1434, 4294901760
    %1436 = vmatmul.mubr.f32.gmra.mrb[0].mxu0 %v1435
    %v1437 = vpop.f32.mrb[0].mxu0
    %v1438 = vadd.f32 %v1361, %v1437
    %v1439 = vpop.f32.mrb[0].mxu0
    %1440 = vdwg.mxu0
    %1441 = vmatprep.subr.mxu0 0.0
    %v1442 = vand.u32 %v1103, 4294901760
    %v1443 = vsub.f32 %v1103, %v1442
    %v1444 = vand.u32 %v1443, 4294901760
    %1445 = vmatpush1.xpose.msra.mxu0 %v1444
    %1446 = vmatprep.subr.mxu0 0.0
    %v1447 = vand.u32 %v1106, 4294901760
    %v1448 = vsub.f32 %v1106, %v1447
    %v1449 = vand.u32 %v1448, 4294901760
    %1450 = vmatpush1.xpose.msra.mxu0 %v1449
    %1451 = vmatprep.subr.mxu0 0.0
    %v1452 = vand.u32 %v1109, 4294901760
    %v1453 = vsub.f32 %v1109, %v1452
    %v1454 = vand.u32 %v1453, 4294901760
    %1455 = vmatpush1.xpose.msra.mxu0 %v1454
    %1456 = vmatprep.subr.mxu0 0.0
    %v1457 = vand.u32 %v1112, 4294901760
    %v1458 = vsub.f32 %v1112, %v1457
    %v1459 = vand.u32 %v1458, 4294901760
    %1460 = vmatpush1.xpose.msra.mxu0 %v1459
    %1461 = vmatprep.subr.mxu0 0.0
    %1462 = vmatpush1.xpose.msra.mxu0 0.0
    %1463 = vmatprep.subr.mxu0 0.0
    %1464 = vmatpush1.xpose.msra.mxu0 0.0
    %1465 = vmatprep.subr.mxu0 0.0
    %1466 = vmatpush1.xpose.msra.mxu0 0.0
    %1467 = vmatprep.subr.mxu0 0.0
    %1468 = vmatpush1.xpose.msra.mxu0 0.0
    %1469 = vmatprep.subr.mxu0 0.0
    %1470 = vmatpush1.xpose.msra.mxu0 0.0
    %1471 = vmatprep.subr.mxu0 0.0
    %1472 = vmatpush1.xpose.msra.mxu0 0.0
    %1473 = vmatprep.subr.mxu0 0.0
    %1474 = vmatpush1.xpose.msra.mxu0 0.0
    %1475 = vmatprep.subr.mxu0 0.0
    %1476 = vmatpush1.xpose.msra.mxu0 0.0
    %1477 = vmatprep.subr.mxu0 0.0
    %1478 = vmatpush1.xpose.msra.mxu0 0.0
    %1479 = vmatprep.subr.mxu0 0.0
    %1480 = vmatpush1.xpose.msra.mxu0 0.0
    %1481 = vmatprep.subr.mxu0 0.0
    %1482 = vmatpush1.xpose.msra.mxu0 0.0
    %1483 = vmatprep.subr.mxu0 0.0
    %1484 = vmatpush1.xpose.msra.mxu0 0.0
    %1485 = vmatprep.subr.mxu0 0.0
    %1486 = vmatpush1.xpose.msra.mxu0 0.0
    %1487 = vmatprep.subr.mxu0 0.0
    %1488 = vmatpush1.xpose.msra.mxu0 0.0
    %1489 = vmatprep.subr.mxu0 0.0
    %1490 = vmatpush1.xpose.msra.mxu0 0.0
    %1491 = vmatprep.subr.mxu0 0.0
    %1492 = vmatpush1.xpose.msra.mxu0 0.0
    %1493 = vmatprep.subr.mxu0 0.0
    %1494 = vmatpush1.xpose.msra.mxu0 0.0
    %1495 = vmatprep.subr.mxu0 0.0
    %1496 = vmatpush1.xpose.msra.mxu0 0.0
    %1497 = vmatprep.subr.mxu0 0.0
    %1498 = vmatpush1.xpose.msra.mxu0 0.0
    %1499 = vmatprep.subr.mxu0 0.0
    %1500 = vmatpush1.xpose.msra.mxu0 0.0
    %1501 = vmatprep.subr.mxu0 0.0
    %1502 = vmatpush1.xpose.msra.mxu0 0.0
    %1503 = vmatprep.subr.mxu0 0.0
    %1504 = vmatpush1.xpose.msra.mxu0 0.0
    %1505 = vmatprep.subr.mxu0 0.0
    %1506 = vmatpush1.xpose.msra.mxu0 0.0
    %1507 = vmatprep.subr.mxu0 0.0
    %1508 = vmatpush1.xpose.msra.mxu0 0.0
    %1509 = vmatprep.subr.mxu0 0.0
    %1510 = vmatpush1.xpose.msra.mxu0 0.0
    %1511 = vmatprep.subr.mxu0 0.0
    %1512 = vmatpush1.xpose.msra.mxu0 0.0
    %1513 = vmatprep.subr.mxu0 0.0
    %1514 = vmatpush1.xpose.msra.mxu0 0.0
    %1515 = vmatprep.subr.mxu0 0.0
    %1516 = vmatpush1.xpose.msra.mxu0 0.0
    %1517 = vmatprep.mubr.f32.mxu0 0.0
    %v1518 = vand.u32 %v1100, 4294901760
    %1519 = vmatmul.mubr.f32.gmra.mrb[0].mxu0 %v1518
    %v1520 = vpop.f32.mrb[0].mxu0
    %v1521 = vadd.f32 %v1438, %v1520
    %v1522 = vpop.f32.mrb[0].mxu0
    %1523 = vdwg.mxu0
    %1524 = vmatprep.subr.mxu0 0.0
    %v1525 = vand.u32 %v1103, 4294901760
    %1526 = vmatpush1.xpose.msra.mxu0 %v1525
    %1527 = vmatprep.subr.mxu0 0.0
    %v1528 = vand.u32 %v1106, 4294901760
    %1529 = vmatpush1.xpose.msra.mxu0 %v1528
    %1530 = vmatprep.subr.mxu0 0.0
    %v1531 = vand.u32 %v1109, 4294901760
    %1532 = vmatpush1.xpose.msra.mxu0 %v1531
    %1533 = vmatprep.subr.mxu0 0.0
    %v1534 = vand.u32 %v1112, 4294901760
    %1535 = vmatpush1.xpose.msra.mxu0 %v1534
    %1536 = vmatprep.subr.mxu0 0.0
    %1537 = vmatpush1.xpose.msra.mxu0 0.0
    %1538 = vmatprep.subr.mxu0 0.0
    %1539 = vmatpush1.xpose.msra.mxu0 0.0
    %1540 = vmatprep.subr.mxu0 0.0
    %1541 = vmatpush1.xpose.msra.mxu0 0.0
    %1542 = vmatprep.subr.mxu0 0.0
    %1543 = vmatpush1.xpose.msra.mxu0 0.0
    %1544 = vmatprep.subr.mxu0 0.0
    %1545 = vmatpush1.xpose.msra.mxu0 0.0
    %1546 = vmatprep.subr.mxu0 0.0
    %1547 = vmatpush1.xpose.msra.mxu0 0.0
    %1548 = vmatprep.subr.mxu0 0.0
    %1549 = vmatpush1.xpose.msra.mxu0 0.0
    %1550 = vmatprep.subr.mxu0 0.0
    %1551 = vmatpush1.xpose.msra.mxu0 0.0
    %1552 = vmatprep.subr.mxu0 0.0
    %1553 = vmatpush1.xpose.msra.mxu0 0.0
    %1554 = vmatprep.subr.mxu0 0.0
    %1555 = vmatpush1.xpose.msra.mxu0 0.0
    %1556 = vmatprep.subr.mxu0 0.0
    %1557 = vmatpush1.xpose.msra.mxu0 0.0
    %1558 = vmatprep.subr.mxu0 0.0
    %1559 = vmatpush1.xpose.msra.mxu0 0.0
    %1560 = vmatprep.subr.mxu0 0.0
    %1561 = vmatpush1.xpose.msra.mxu0 0.0
    %1562 = vmatprep.subr.mxu0 0.0
    %1563 = vmatpush1.xpose.msra.mxu0 0.0
    %1564 = vmatprep.subr.mxu0 0.0
    %1565 = vmatpush1.xpose.msra.mxu0 0.0
    %1566 = vmatprep.subr.mxu0 0.0
    %1567 = vmatpush1.xpose.msra.mxu0 0.0
    %1568 = vmatprep.subr.mxu0 0.0
    %1569 = vmatpush1.xpose.msra.mxu0 0.0
    %1570 = vmatprep.subr.mxu0 0.0
    %1571 = vmatpush1.xpose.msra.mxu0 0.0
    %1572 = vmatprep.subr.mxu0 0.0
    %1573 = vmatpush1.xpose.msra.mxu0 0.0
    %1574 = vmatprep.subr.mxu0 0.0
    %1575 = vmatpush1.xpose.msra.mxu0 0.0
    %1576 = vmatprep.subr.mxu0 0.0
    %1577 = vmatpush1.xpose.msra.mxu0 0.0
    %1578 = vmatprep.subr.mxu0 0.0
    %1579 = vmatpush1.xpose.msra.mxu0 0.0
    %1580 = vmatprep.subr.mxu0 0.0
    %1581 = vmatpush1.xpose.msra.mxu0 0.0
    %1582 = vmatprep.subr.mxu0 0.0
    %1583 = vmatpush1.xpose.msra.mxu0 0.0
    %1584 = vmatprep.subr.mxu0 0.0
    %1585 = vmatpush1.xpose.msra.mxu0 0.0
    %1586 = vmatprep.subr.mxu0 0.0
    %1587 = vmatpush1.xpose.msra.mxu0 0.0
    %1588 = vmatprep.subr.mxu0 0.0
    %1589 = vmatpush1.xpose.msra.mxu0 0.0
    %1590 = vmatprep.subr.mxu0 0.0
    %1591 = vmatpush1.xpose.msra.mxu0 0.0
    %1592 = vmatprep.mubr.f32.mxu0 0.0
    %v1593 = vand.u32 %v1100, 4294901760
    %1594 = vmatmul.mubr.f32.gmra.mrb[0].mxu0 %v1593
    %v1595 = vpop.f32.mrb[0].mxu0
    %v1596 = vadd.f32 %v1521, %v1595
    %v1597 = vpop.f32.mrb[0].mxu0
    %1598 = vdwg.mxu0
    %v1599 = vtanh.pop %v1596
    %s1600 = scalar_lea.vmem [#allocation7], 64
    %v1601 = vld [vmem:[%s1600] sm:$0xff]
    %v1602 = vld [vmem:[%s1600 + $0x8] sm:$0xff]
    %v1603 = vld [vmem:[%s1600 + $0x10] sm:$0xff]
    %v1604 = vld [vmem:[%s1600 + $0x18] sm:$0xff]
    %s1605 = scalar_lea.vmem %s4, 2
    %v1606 = vld [vmem:[%s1605] sm:$0x1]
    %v1608 = vlaneseq
    %v1609 = vshrl.u32 %v1608, 7
    %v1610 = vsub.s32 0, %v1609
    %v1611 = vrot.slane %v1606, %v1610
    %v1614 = vsel %vm72, %v1599, 0
    %v1617 = vsel %vm72, %v1601, 0
    %v1620 = vsel %vm72, %v1602, 0
    %v1623 = vsel %vm72, %v1603, 0
    %v1626 = vsel %vm72, %v1604, 0
    %1628 = vmatprep.subr.mxu0 0.0
    %v1629 = vand.u32 %v1617, 4294901760
    %1630 = vmatpush1.xpose.msra.mxu0 %v1629
    %1631 = vmatprep.subr.mxu0 0.0
    %v1632 = vand.u32 %v1620, 4294901760
    %1633 = vmatpush1.xpose.msra.mxu0 %v1632
    %1634 = vmatprep.subr.mxu0 0.0
    %v1635 = vand.u32 %v1623, 4294901760
    %1636 = vmatpush1.xpose.msra.mxu0 %v1635
    %1637 = vmatprep.subr.mxu0 0.0
    %v1638 = vand.u32 %v1626, 4294901760
    %1639 = vmatpush1.xpose.msra.mxu0 %v1638
    %1640 = vmatprep.subr.mxu0 0.0
    %1641 = vmatpush1.xpose.msra.mxu0 0.0
    %1642 = vmatprep.subr.mxu0 0.0
    %1643 = vmatpush1.xpose.msra.mxu0 0.0
    %1644 = vmatprep.subr.mxu0 0.0
    %1645 = vmatpush1.xpose.msra.mxu0 0.0
    %1646 = vmatprep.subr.mxu0 0.0
    %1647 = vmatpush1.xpose.msra.mxu0 0.0
    %1648 = vmatprep.subr.mxu0 0.0
    %1649 = vmatpush1.xpose.msra.mxu0 0.0
    %1650 = vmatprep.subr.mxu0 0.0
    %1651 = vmatpush1.xpose.msra.mxu0 0.0
    %1652 = vmatprep.subr.mxu0 0.0
    %1653 = vmatpush1.xpose.msra.mxu0 0.0
    %1654 = vmatprep.subr.mxu0 0.0
    %1655 = vmatpush1.xpose.msra.mxu0 0.0
    %1656 = vmatprep.subr.mxu0 0.0
    %1657 = vmatpush1.xpose.msra.mxu0 0.0
    %1658 = vmatprep.subr.mxu0 0.0
    %1659 = vmatpush1.xpose.msra.mxu0 0.0
    %1660 = vmatprep.subr.mxu0 0.0
    %1661 = vmatpush1.xpose.msra.mxu0 0.0
    %1662 = vmatprep.subr.mxu0 0.0
    %1663 = vmatpush1.xpose.msra.mxu0 0.0
    %1664 = vmatprep.subr.mxu0 0.0
    %1665 = vmatpush1.xpose.msra.mxu0 0.0
    %1666 = vmatprep.subr.mxu0 0.0
    %1667 = vmatpush1.xpose.msra.mxu0 0.0
    %1668 = vmatprep.subr.mxu0 0.0
    %1669 = vmatpush1.xpose.msra.mxu0 0.0
    %1670 = vmatprep.subr.mxu0 0.0
    %1671 = vmatpush1.xpose.msra.mxu0 0.0
    %1672 = vmatprep.subr.mxu0 0.0
    %1673 = vmatpush1.xpose.msra.mxu0 0.0
    %1674 = vmatprep.subr.mxu0 0.0
    %1675 = vmatpush1.xpose.msra.mxu0 0.0
    %1676 = vmatprep.subr.mxu0 0.0
    %1677 = vmatpush1.xpose.msra.mxu0 0.0
    %1678 = vmatprep.subr.mxu0 0.0
    %1679 = vmatpush1.xpose.msra.mxu0 0.0
    %1680 = vmatprep.subr.mxu0 0.0
    %1681 = vmatpush1.xpose.msra.mxu0 0.0
    %1682 = vmatprep.subr.mxu0 0.0
    %1683 = vmatpush1.xpose.msra.mxu0 0.0
    %1684 = vmatprep.subr.mxu0 0.0
    %1685 = vmatpush1.xpose.msra.mxu0 0.0
    %1686 = vmatprep.subr.mxu0 0.0
    %1687 = vmatpush1.xpose.msra.mxu0 0.0
    %1688 = vmatprep.subr.mxu0 0.0
    %1689 = vmatpush1.xpose.msra.mxu0 0.0
    %1690 = vmatprep.subr.mxu0 0.0
    %1691 = vmatpush1.xpose.msra.mxu0 0.0
    %1692 = vmatprep.subr.mxu0 0.0
    %1693 = vmatpush1.xpose.msra.mxu0 0.0
    %1694 = vmatprep.subr.mxu0 0.0
    %1695 = vmatpush1.xpose.msra.mxu0 0.0
    %1696 = vmatprep.mubr.f32.mxu0 0.0
    %v1697 = vand.u32 %v1614, 4294901760
    %v1698 = vsub.f32 %v1614, %v1697
    %v1699 = vand.u32 %v1698, 4294901760
    %v1700 = vsub.f32 %v1698, %v1699
    %v1701 = vand.u32 %v1700, 4294901760
    %1702 = vmatmul.mubr.f32.gmra.mrb[0].mxu0 %v1701
    %v1703 = vpop.f32.mrb[0].mxu0
    %v1704 = vadd.f32 %v1611, %v1703
    %v1705 = vpop.f32.mrb[0].mxu0
    %1706 = vdwg.mxu0
    %1707 = vmatprep.subr.mxu0 0.0
    %v1708 = vand.u32 %v1617, 4294901760
    %v1709 = vsub.f32 %v1617, %v1708
    %v1710 = vand.u32 %v1709, 4294901760
    %v1711 = vsub.f32 %v1709, %v1710
    %v1712 = vand.u32 %v1711, 4294901760
    %1713 = vmatpush1.xpose.msra.mxu0 %v1712
    %1714 = vmatprep.subr.mxu0 0.0
    %v1715 = vand.u32 %v1620, 4294901760
    %v1716 = vsub.f32 %v1620, %v1715
    %v1717 = vand.u32 %v1716, 4294901760
    %v1718 = vsub.f32 %v1716, %v1717
    %v1719 = vand.u32 %v1718, 4294901760
    %1720 = vmatpush1.xpose.msra.mxu0 %v1719
    %1721 = vmatprep.subr.mxu0 0.0
    %v1722 = vand.u32 %v1623, 4294901760
    %v1723 = vsub.f32 %v1623, %v1722
    %v1724 = vand.u32 %v1723, 4294901760
    %v1725 = vsub.f32 %v1723, %v1724
    %v1726 = vand.u32 %v1725, 4294901760
    %1727 = vmatpush1.xpose.msra.mxu0 %v1726
    %1728 = vmatprep.subr.mxu0 0.0
    %v1729 = vand.u32 %v1626, 4294901760
    %v1730 = vsub.f32 %v1626, %v1729
    %v1731 = vand.u32 %v1730, 4294901760
    %v1732 = vsub.f32 %v1730, %v1731
    %v1733 = vand.u32 %v1732, 4294901760
    %1734 = vmatpush1.xpose.msra.mxu0 %v1733
    %1735 = vmatprep.subr.mxu0 0.0
    %1736 = vmatpush1.xpose.msra.mxu0 0.0
    %1737 = vmatprep.subr.mxu0 0.0
    %1738 = vmatpush1.xpose.msra.mxu0 0.0
    %1739 = vmatprep.subr.mxu0 0.0
    %1740 = vmatpush1.xpose.msra.mxu0 0.0
    %1741 = vmatprep.subr.mxu0 0.0
    %1742 = vmatpush1.xpose.msra.mxu0 0.0
    %1743 = vmatprep.subr.mxu0 0.0
    %1744 = vmatpush1.xpose.msra.mxu0 0.0
    %1745 = vmatprep.subr.mxu0 0.0
    %1746 = vmatpush1.xpose.msra.mxu0 0.0
    %1747 = vmatprep.subr.mxu0 0.0
    %1748 = vmatpush1.xpose.msra.mxu0 0.0
    %1749 = vmatprep.subr.mxu0 0.0
    %1750 = vmatpush1.xpose.msra.mxu0 0.0
    %1751 = vmatprep.subr.mxu0 0.0
    %1752 = vmatpush1.xpose.msra.mxu0 0.0
    %1753 = vmatprep.subr.mxu0 0.0
    %1754 = vmatpush1.xpose.msra.mxu0 0.0
    %1755 = vmatprep.subr.mxu0 0.0
    %1756 = vmatpush1.xpose.msra.mxu0 0.0
    %1757 = vmatprep.subr.mxu0 0.0
    %1758 = vmatpush1.xpose.msra.mxu0 0.0
    %1759 = vmatprep.subr.mxu0 0.0
    %1760 = vmatpush1.xpose.msra.mxu0 0.0
    %1761 = vmatprep.subr.mxu0 0.0
    %1762 = vmatpush1.xpose.msra.mxu0 0.0
    %1763 = vmatprep.subr.mxu0 0.0
    %1764 = vmatpush1.xpose.msra.mxu0 0.0
    %1765 = vmatprep.subr.mxu0 0.0
    %1766 = vmatpush1.xpose.msra.mxu0 0.0
    %1767 = vmatprep.subr.mxu0 0.0
    %1768 = vmatpush1.xpose.msra.mxu0 0.0
    %1769 = vmatprep.subr.mxu0 0.0
    %1770 = vmatpush1.xpose.msra.mxu0 0.0
    %1771 = vmatprep.subr.mxu0 0.0
    %1772 = vmatpush1.xpose.msra.mxu0 0.0
    %1773 = vmatprep.subr.mxu0 0.0
    %1774 = vmatpush1.xpose.msra.mxu0 0.0
    %1775 = vmatprep.subr.mxu0 0.0
    %1776 = vmatpush1.xpose.msra.mxu0 0.0
    %1777 = vmatprep.subr.mxu0 0.0
    %1778 = vmatpush1.xpose.msra.mxu0 0.0
    %1779 = vmatprep.subr.mxu0 0.0
    %1780 = vmatpush1.xpose.msra.mxu0 0.0
    %1781 = vmatprep.subr.mxu0 0.0
    %1782 = vmatpush1.xpose.msra.mxu0 0.0
    %1783 = vmatprep.subr.mxu0 0.0
    %1784 = vmatpush1.xpose.msra.mxu0 0.0
    %1785 = vmatprep.subr.mxu0 0.0
    %1786 = vmatpush1.xpose.msra.mxu0 0.0
    %1787 = vmatprep.subr.mxu0 0.0
    %1788 = vmatpush1.xpose.msra.mxu0 0.0
    %1789 = vmatprep.subr.mxu0 0.0
    %1790 = vmatpush1.xpose.msra.mxu0 0.0
    %1791 = vmatprep.mubr.f32.mxu0 0.0
    %v1792 = vand.u32 %v1614, 4294901760
    %1793 = vmatmul.mubr.f32.gmra.mrb[0].mxu0 %v1792
    %v1794 = vpop.f32.mrb[0].mxu0
    %v1795 = vadd.f32 %v1704, %v1794
    %v1796 = vpop.f32.mrb[0].mxu0
    %1797 = vdwg.mxu0
    %1798 = vmatprep.subr.mxu0 0.0
    %v1799 = vand.u32 %v1617, 4294901760
    %v1800 = vsub.f32 %v1617, %v1799
    %1801 = vmatpush1.xpose.msra.mxu0 %v1800
    %1802 = vmatprep.subr.mxu0 0.0
    %v1803 = vand.u32 %v1620, 4294901760
    %v1804 = vsub.f32 %v1620, %v1803
    %1805 = vmatpush1.xpose.msra.mxu0 %v1804
    %1806 = vmatprep.subr.mxu0 0.0
    %v1807 = vand.u32 %v1623, 4294901760
    %v1808 = vsub.f32 %v1623, %v1807
    %1809 = vmatpush1.xpose.msra.mxu0 %v1808
    %1810 = vmatprep.subr.mxu0 0.0
    %v1811 = vand.u32 %v1626, 4294901760
    %v1812 = vsub.f32 %v1626, %v1811
    %1813 = vmatpush1.xpose.msra.mxu0 %v1812
    %1814 = vmatprep.subr.mxu0 0.0
    %1815 = vmatpush1.xpose.msra.mxu0 0.0
    %1816 = vmatprep.subr.mxu0 0.0
    %1817 = vmatpush1.xpose.msra.mxu0 0.0
    %1818 = vmatprep.subr.mxu0 0.0
    %1819 = vmatpush1.xpose.msra.mxu0 0.0
    %1820 = vmatprep.subr.mxu0 0.0
    %1821 = vmatpush1.xpose.msra.mxu0 0.0
    %1822 = vmatprep.subr.mxu0 0.0
    %1823 = vmatpush1.xpose.msra.mxu0 0.0
    %1824 = vmatprep.subr.mxu0 0.0
    %1825 = vmatpush1.xpose.msra.mxu0 0.0
    %1826 = vmatprep.subr.mxu0 0.0
    %1827 = vmatpush1.xpose.msra.mxu0 0.0
    %1828 = vmatprep.subr.mxu0 0.0
    %1829 = vmatpush1.xpose.msra.mxu0 0.0
    %1830 = vmatprep.subr.mxu0 0.0
    %1831 = vmatpush1.xpose.msra.mxu0 0.0
    %1832 = vmatprep.subr.mxu0 0.0
    %1833 = vmatpush1.xpose.msra.mxu0 0.0
    %1834 = vmatprep.subr.mxu0 0.0
    %1835 = vmatpush1.xpose.msra.mxu0 0.0
    %1836 = vmatprep.subr.mxu0 0.0
    %1837 = vmatpush1.xpose.msra.mxu0 0.0
    %1838 = vmatprep.subr.mxu0 0.0
    %1839 = vmatpush1.xpose.msra.mxu0 0.0
    %1840 = vmatprep.subr.mxu0 0.0
    %1841 = vmatpush1.xpose.msra.mxu0 0.0
    %1842 = vmatprep.subr.mxu0 0.0
    %1843 = vmatpush1.xpose.msra.mxu0 0.0
    %1844 = vmatprep.subr.mxu0 0.0
    %1845 = vmatpush1.xpose.msra.mxu0 0.0
    %1846 = vmatprep.subr.mxu0 0.0
    %1847 = vmatpush1.xpose.msra.mxu0 0.0
    %1848 = vmatprep.subr.mxu0 0.0
    %1849 = vmatpush1.xpose.msra.mxu0 0.0
    %1850 = vmatprep.subr.mxu0 0.0
    %1851 = vmatpush1.xpose.msra.mxu0 0.0
    %1852 = vmatprep.subr.mxu0 0.0
    %1853 = vmatpush1.xpose.msra.mxu0 0.0
    %1854 = vmatprep.subr.mxu0 0.0
    %1855 = vmatpush1.xpose.msra.mxu0 0.0
    %1856 = vmatprep.subr.mxu0 0.0
    %1857 = vmatpush1.xpose.msra.mxu0 0.0
    %1858 = vmatprep.subr.mxu0 0.0
    %1859 = vmatpush1.xpose.msra.mxu0 0.0
    %1860 = vmatprep.subr.mxu0 0.0
    %1861 = vmatpush1.xpose.msra.mxu0 0.0
    %1862 = vmatprep.subr.mxu0 0.0
    %1863 = vmatpush1.xpose.msra.mxu0 0.0
    %1864 = vmatprep.subr.mxu0 0.0
    %1865 = vmatpush1.xpose.msra.mxu0 0.0
    %1866 = vmatprep.subr.mxu0 0.0
    %1867 = vmatpush1.xpose.msra.mxu0 0.0
    %1868 = vmatprep.subr.mxu0 0.0
    %1869 = vmatpush1.xpose.msra.mxu0 0.0
    %1870 = vmatprep.mubr.f32.mxu0 0.0
    %v1871 = vand.u32 %v1614, 4294901760
    %v1872 = vsub.f32 %v1614, %v1871
    %1873 = vmatmul.mubr.f32.gmra.mrb[0].mxu0 %v1872
    %v1874 = vpop.f32.mrb[0].mxu0
    %v1875 = vadd.f32 %v1795, %v1874
    %v1876 = vpop.f32.mrb[0].mxu0
    %1877 = vdwg.mxu0
    %1878 = vmatprep.subr.mxu0 0.0
    %v1879 = vand.u32 %v1617, 4294901760
    %1880 = vmatpush1.xpose.msra.mxu0 %v1879
    %1881 = vmatprep.subr.mxu0 0.0
    %v1882 = vand.u32 %v1620, 4294901760
    %1883 = vmatpush1.xpose.msra.mxu0 %v1882
    %1884 = vmatprep.subr.mxu0 0.0
    %v1885 = vand.u32 %v1623, 4294901760
    %1886 = vmatpush1.xpose.msra.mxu0 %v1885
    %1887 = vmatprep.subr.mxu0 0.0
    %v1888 = vand.u32 %v1626, 4294901760
    %1889 = vmatpush1.xpose.msra.mxu0 %v1888
    %1890 = vmatprep.subr.mxu0 0.0
    %1891 = vmatpush1.xpose.msra.mxu0 0.0
    %1892 = vmatprep.subr.mxu0 0.0
    %1893 = vmatpush1.xpose.msra.mxu0 0.0
    %1894 = vmatprep.subr.mxu0 0.0
    %1895 = vmatpush1.xpose.msra.mxu0 0.0
    %1896 = vmatprep.subr.mxu0 0.0
    %1897 = vmatpush1.xpose.msra.mxu0 0.0
    %1898 = vmatprep.subr.mxu0 0.0
    %1899 = vmatpush1.xpose.msra.mxu0 0.0
    %1900 = vmatprep.subr.mxu0 0.0
    %1901 = vmatpush1.xpose.msra.mxu0 0.0
    %1902 = vmatprep.subr.mxu0 0.0
    %1903 = vmatpush1.xpose.msra.mxu0 0.0
    %1904 = vmatprep.subr.mxu0 0.0
    %1905 = vmatpush1.xpose.msra.mxu0 0.0
    %1906 = vmatprep.subr.mxu0 0.0
    %1907 = vmatpush1.xpose.msra.mxu0 0.0
    %1908 = vmatprep.subr.mxu0 0.0
    %1909 = vmatpush1.xpose.msra.mxu0 0.0
    %1910 = vmatprep.subr.mxu0 0.0
    %1911 = vmatpush1.xpose.msra.mxu0 0.0
    %1912 = vmatprep.subr.mxu0 0.0
    %1913 = vmatpush1.xpose.msra.mxu0 0.0
    %1914 = vmatprep.subr.mxu0 0.0
    %1915 = vmatpush1.xpose.msra.mxu0 0.0
    %1916 = vmatprep.subr.mxu0 0.0
    %1917 = vmatpush1.xpose.msra.mxu0 0.0
    %1918 = vmatprep.subr.mxu0 0.0
    %1919 = vmatpush1.xpose.msra.mxu0 0.0
    %1920 = vmatprep.subr.mxu0 0.0
    %1921 = vmatpush1.xpose.msra.mxu0 0.0
    %1922 = vmatprep.subr.mxu0 0.0
    %1923 = vmatpush1.xpose.msra.mxu0 0.0
    %1924 = vmatprep.subr.mxu0 0.0
    %1925 = vmatpush1.xpose.msra.mxu0 0.0
    %1926 = vmatprep.subr.mxu0 0.0
    %1927 = vmatpush1.xpose.msra.mxu0 0.0
    %1928 = vmatprep.subr.mxu0 0.0
    %1929 = vmatpush1.xpose.msra.mxu0 0.0
    %1930 = vmatprep.subr.mxu0 0.0
    %1931 = vmatpush1.xpose.msra.mxu0 0.0
    %1932 = vmatprep.subr.mxu0 0.0
    %1933 = vmatpush1.xpose.msra.mxu0 0.0
    %1934 = vmatprep.subr.mxu0 0.0
    %1935 = vmatpush1.xpose.msra.mxu0 0.0
    %1936 = vmatprep.subr.mxu0 0.0
    %1937 = vmatpush1.xpose.msra.mxu0 0.0
    %1938 = vmatprep.subr.mxu0 0.0
    %1939 = vmatpush1.xpose.msra.mxu0 0.0
    %1940 = vmatprep.subr.mxu0 0.0
    %1941 = vmatpush1.xpose.msra.mxu0 0.0
    %1942 = vmatprep.subr.mxu0 0.0
    %1943 = vmatpush1.xpose.msra.mxu0 0.0
    %1944 = vmatprep.subr.mxu0 0.0
    %1945 = vmatpush1.xpose.msra.mxu0 0.0
    %1946 = vmatprep.mubr.f32.mxu0 0.0
    %v1947 = vand.u32 %v1614, 4294901760
    %v1948 = vsub.f32 %v1614, %v1947
    %v1949 = vand.u32 %v1948, 4294901760
    %1950 = vmatmul.mubr.f32.gmra.mrb[0].mxu0 %v1949
    %v1951 = vpop.f32.mrb[0].mxu0
    %v1952 = vadd.f32 %v1875, %v1951
    %v1953 = vpop.f32.mrb[0].mxu0
    %1954 = vdwg.mxu0
    %1955 = vmatprep.subr.mxu0 0.0
    %v1956 = vand.u32 %v1617, 4294901760
    %v1957 = vsub.f32 %v1617, %v1956
    %v1958 = vand.u32 %v1957, 4294901760
    %1959 = vmatpush1.xpose.msra.mxu0 %v1958
    %1960 = vmatprep.subr.mxu0 0.0
    %v1961 = vand.u32 %v1620, 4294901760
    %v1962 = vsub.f32 %v1620, %v1961
    %v1963 = vand.u32 %v1962, 4294901760
    %1964 = vmatpush1.xpose.msra.mxu0 %v1963
    %1965 = vmatprep.subr.mxu0 0.0
    %v1966 = vand.u32 %v1623, 4294901760
    %v1967 = vsub.f32 %v1623, %v1966
    %v1968 = vand.u32 %v1967, 4294901760
    %1969 = vmatpush1.xpose.msra.mxu0 %v1968
    %1970 = vmatprep.subr.mxu0 0.0
    %v1971 = vand.u32 %v1626, 4294901760
    %v1972 = vsub.f32 %v1626, %v1971
    %v1973 = vand.u32 %v1972, 4294901760
    %1974 = vmatpush1.xpose.msra.mxu0 %v1973
    %1975 = vmatprep.subr.mxu0 0.0
    %1976 = vmatpush1.xpose.msra.mxu0 0.0
    %1977 = vmatprep.subr.mxu0 0.0
    %1978 = vmatpush1.xpose.msra.mxu0 0.0
    %1979 = vmatprep.subr.mxu0 0.0
    %1980 = vmatpush1.xpose.msra.mxu0 0.0
    %1981 = vmatprep.subr.mxu0 0.0
    %1982 = vmatpush1.xpose.msra.mxu0 0.0
    %1983 = vmatprep.subr.mxu0 0.0
    %1984 = vmatpush1.xpose.msra.mxu0 0.0
    %1985 = vmatprep.subr.mxu0 0.0
    %1986 = vmatpush1.xpose.msra.mxu0 0.0
    %1987 = vmatprep.subr.mxu0 0.0
    %1988 = vmatpush1.xpose.msra.mxu0 0.0
    %1989 = vmatprep.subr.mxu0 0.0
    %1990 = vmatpush1.xpose.msra.mxu0 0.0
    %1991 = vmatprep.subr.mxu0 0.0
    %1992 = vmatpush1.xpose.msra.mxu0 0.0
    %1993 = vmatprep.subr.mxu0 0.0
    %1994 = vmatpush1.xpose.msra.mxu0 0.0
    %1995 = vmatprep.subr.mxu0 0.0
    %1996 = vmatpush1.xpose.msra.mxu0 0.0
    %1997 = vmatprep.subr.mxu0 0.0
    %1998 = vmatpush1.xpose.msra.mxu0 0.0
    %1999 = vmatprep.subr.mxu0 0.0
    %2000 = vmatpush1.xpose.msra.mxu0 0.0
    %2001 = vmatprep.subr.mxu0 0.0
    %2002 = vmatpush1.xpose.msra.mxu0 0.0
    %2003 = vmatprep.subr.mxu0 0.0
    %2004 = vmatpush1.xpose.msra.mxu0 0.0
    %2005 = vmatprep.subr.mxu0 0.0
    %2006 = vmatpush1.xpose.msra.mxu0 0.0
    %2007 = vmatprep.subr.mxu0 0.0
    %2008 = vmatpush1.xpose.msra.mxu0 0.0
    %2009 = vmatprep.subr.mxu0 0.0
    %2010 = vmatpush1.xpose.msra.mxu0 0.0
    %2011 = vmatprep.subr.mxu0 0.0
    %2012 = vmatpush1.xpose.msra.mxu0 0.0
    %2013 = vmatprep.subr.mxu0 0.0
    %2014 = vmatpush1.xpose.msra.mxu0 0.0
    %2015 = vmatprep.subr.mxu0 0.0
    %2016 = vmatpush1.xpose.msra.mxu0 0.0
    %2017 = vmatprep.subr.mxu0 0.0
    %2018 = vmatpush1.xpose.msra.mxu0 0.0
    %2019 = vmatprep.subr.mxu0 0.0
    %2020 = vmatpush1.xpose.msra.mxu0 0.0
    %2021 = vmatprep.subr.mxu0 0.0
    %2022 = vmatpush1.xpose.msra.mxu0 0.0
    %2023 = vmatprep.subr.mxu0 0.0
    %2024 = vmatpush1.xpose.msra.mxu0 0.0
    %2025 = vmatprep.subr.mxu0 0.0
    %2026 = vmatpush1.xpose.msra.mxu0 0.0
    %2027 = vmatprep.subr.mxu0 0.0
    %2028 = vmatpush1.xpose.msra.mxu0 0.0
    %2029 = vmatprep.subr.mxu0 0.0
    %2030 = vmatpush1.xpose.msra.mxu0 0.0
    %2031 = vmatprep.mubr.f32.mxu0 0.0
    %v2032 = vand.u32 %v1614, 4294901760
    %2033 = vmatmul.mubr.f32.gmra.mrb[0].mxu0 %v2032
    %v2034 = vpop.f32.mrb[0].mxu0
    %v2035 = vadd.f32 %v1952, %v2034
    %v2036 = vpop.f32.mrb[0].mxu0
    %2037 = vdwg.mxu0
    %2038 = vmatprep.subr.mxu0 0.0
    %v2039 = vand.u32 %v1617, 4294901760
    %2040 = vmatpush1.xpose.msra.mxu0 %v2039
    %2041 = vmatprep.subr.mxu0 0.0
    %v2042 = vand.u32 %v1620, 4294901760
    %2043 = vmatpush1.xpose.msra.mxu0 %v2042
    %2044 = vmatprep.subr.mxu0 0.0
    %v2045 = vand.u32 %v1623, 4294901760
    %2046 = vmatpush1.xpose.msra.mxu0 %v2045
    %2047 = vmatprep.subr.mxu0 0.0
    %v2048 = vand.u32 %v1626, 4294901760
    %2049 = vmatpush1.xpose.msra.mxu0 %v2048
    %2050 = vmatprep.subr.mxu0 0.0
    %2051 = vmatpush1.xpose.msra.mxu0 0.0
    %2052 = vmatprep.subr.mxu0 0.0
    %2053 = vmatpush1.xpose.msra.mxu0 0.0
    %2054 = vmatprep.subr.mxu0 0.0
    %2055 = vmatpush1.xpose.msra.mxu0 0.0
    %2056 = vmatprep.subr.mxu0 0.0
    %2057 = vmatpush1.xpose.msra.mxu0 0.0
    %2058 = vmatprep.subr.mxu0 0.0
    %2059 = vmatpush1.xpose.msra.mxu0 0.0
    %2060 = vmatprep.subr.mxu0 0.0
    %2061 = vmatpush1.xpose.msra.mxu0 0.0
    %2062 = vmatprep.subr.mxu0 0.0
    %2063 = vmatpush1.xpose.msra.mxu0 0.0
    %2064 = vmatprep.subr.mxu0 0.0
    %2065 = vmatpush1.xpose.msra.mxu0 0.0
    %2066 = vmatprep.subr.mxu0 0.0
    %2067 = vmatpush1.xpose.msra.mxu0 0.0
    %2068 = vmatprep.subr.mxu0 0.0
    %2069 = vmatpush1.xpose.msra.mxu0 0.0
    %2070 = vmatprep.subr.mxu0 0.0
    %2071 = vmatpush1.xpose.msra.mxu0 0.0
    %2072 = vmatprep.subr.mxu0 0.0
    %2073 = vmatpush1.xpose.msra.mxu0 0.0
    %2074 = vmatprep.subr.mxu0 0.0
    %2075 = vmatpush1.xpose.msra.mxu0 0.0
    %2076 = vmatprep.subr.mxu0 0.0
    %2077 = vmatpush1.xpose.msra.mxu0 0.0
    %2078 = vmatprep.subr.mxu0 0.0
    %2079 = vmatpush1.xpose.msra.mxu0 0.0
    %2080 = vmatprep.subr.mxu0 0.0
    %2081 = vmatpush1.xpose.msra.mxu0 0.0
    %2082 = vmatprep.subr.mxu0 0.0
    %2083 = vmatpush1.xpose.msra.mxu0 0.0
    %2084 = vmatprep.subr.mxu0 0.0
    %2085 = vmatpush1.xpose.msra.mxu0 0.0
    %2086 = vmatprep.subr.mxu0 0.0
    %2087 = vmatpush1.xpose.msra.mxu0 0.0
    %2088 = vmatprep.subr.mxu0 0.0
    %2089 = vmatpush1.xpose.msra.mxu0 0.0
    %2090 = vmatprep.subr.mxu0 0.0
    %2091 = vmatpush1.xpose.msra.mxu0 0.0
    %2092 = vmatprep.subr.mxu0 0.0
    %2093 = vmatpush1.xpose.msra.mxu0 0.0
    %2094 = vmatprep.subr.mxu0 0.0
    %2095 = vmatpush1.xpose.msra.mxu0 0.0
    %2096 = vmatprep.subr.mxu0 0.0
    %2097 = vmatpush1.xpose.msra.mxu0 0.0
    %2098 = vmatprep.subr.mxu0 0.0
    %2099 = vmatpush1.xpose.msra.mxu0 0.0
    %2100 = vmatprep.subr.mxu0 0.0
    %2101 = vmatpush1.xpose.msra.mxu0 0.0
    %2102 = vmatprep.subr.mxu0 0.0
    %2103 = vmatpush1.xpose.msra.mxu0 0.0
    %2104 = vmatprep.subr.mxu0 0.0
    %2105 = vmatpush1.xpose.msra.mxu0 0.0
    %2106 = vmatprep.mubr.f32.mxu0 0.0
    %v2107 = vand.u32 %v1614, 4294901760
    %2108 = vmatmul.mubr.f32.gmra.mrb[0].mxu0 %v2107
    %v2109 = vpop.f32.mrb[0].mxu0
    %v2110 = vadd.f32 %v2035, %v2109
    %v2111 = vpop.f32.mrb[0].mxu0
    %2112 = vdwg.mxu0
    %v2113 = vtanh.pop %v2110
    %v2115 = vsel %vm72, %v2113, 0
    %2117 = vmatprep.subr.mxu0 0.0
    %v2118 = vand.u32 %v1617, 4294901760
    %2119 = vmatpush1.xpose.msra.mxu0 %v2118
    %2120 = vmatprep.subr.mxu0 0.0
    %v2121 = vand.u32 %v1620, 4294901760
    %2122 = vmatpush1.xpose.msra.mxu0 %v2121
    %2123 = vmatprep.subr.mxu0 0.0
    %v2124 = vand.u32 %v1623, 4294901760
    %2125 = vmatpush1.xpose.msra.mxu0 %v2124
    %2126 = vmatprep.subr.mxu0 0.0
    %v2127 = vand.u32 %v1626, 4294901760
    %2128 = vmatpush1.xpose.msra.mxu0 %v2127
    %2129 = vmatprep.subr.mxu0 0.0
    %2130 = vmatpush1.xpose.msra.mxu0 0.0
    %2131 = vmatprep.subr.mxu0 0.0
    %2132 = vmatpush1.xpose.msra.mxu0 0.0
    %2133 = vmatprep.subr.mxu0 0.0
    %2134 = vmatpush1.xpose.msra.mxu0 0.0
    %2135 = vmatprep.subr.mxu0 0.0
    %2136 = vmatpush1.xpose.msra.mxu0 0.0
    %2137 = vmatprep.subr.mxu0 0.0
    %2138 = vmatpush1.xpose.msra.mxu0 0.0
    %2139 = vmatprep.subr.mxu0 0.0
    %2140 = vmatpush1.xpose.msra.mxu0 0.0
    %2141 = vmatprep.subr.mxu0 0.0
    %2142 = vmatpush1.xpose.msra.mxu0 0.0
    %2143 = vmatprep.subr.mxu0 0.0
    %2144 = vmatpush1.xpose.msra.mxu0 0.0
    %2145 = vmatprep.subr.mxu0 0.0
    %2146 = vmatpush1.xpose.msra.mxu0 0.0
    %2147 = vmatprep.subr.mxu0 0.0
    %2148 = vmatpush1.xpose.msra.mxu0 0.0
    %2149 = vmatprep.subr.mxu0 0.0
    %2150 = vmatpush1.xpose.msra.mxu0 0.0
    %2151 = vmatprep.subr.mxu0 0.0
    %2152 = vmatpush1.xpose.msra.mxu0 0.0
    %2153 = vmatprep.subr.mxu0 0.0
    %2154 = vmatpush1.xpose.msra.mxu0 0.0
    %2155 = vmatprep.subr.mxu0 0.0
    %2156 = vmatpush1.xpose.msra.mxu0 0.0
    %2157 = vmatprep.subr.mxu0 0.0
    %2158 = vmatpush1.xpose.msra.mxu0 0.0
    %2159 = vmatprep.subr.mxu0 0.0
    %2160 = vmatpush1.xpose.msra.mxu0 0.0
    %2161 = vmatprep.subr.mxu0 0.0
    %2162 = vmatpush1.xpose.msra.mxu0 0.0
    %2163 = vmatprep.subr.mxu0 0.0
    %2164 = vmatpush1.xpose.msra.mxu0 0.0
    %2165 = vmatprep.subr.mxu0 0.0
    %2166 = vmatpush1.xpose.msra.mxu0 0.0
    %2167 = vmatprep.subr.mxu0 0.0
    %2168 = vmatpush1.xpose.msra.mxu0 0.0
    %2169 = vmatprep.subr.mxu0 0.0
    %2170 = vmatpush1.xpose.msra.mxu0 0.0
    %2171 = vmatprep.subr.mxu0 0.0
    %2172 = vmatpush1.xpose.msra.mxu0 0.0
    %2173 = vmatprep.subr.mxu0 0.0
    %2174 = vmatpush1.xpose.msra.mxu0 0.0
    %2175 = vmatprep.subr.mxu0 0.0
    %2176 = vmatpush1.xpose.msra.mxu0 0.0
    %2177 = vmatprep.subr.mxu0 0.0
    %2178 = vmatpush1.xpose.msra.mxu0 0.0
    %2179 = vmatprep.subr.mxu0 0.0
    %2180 = vmatpush1.xpose.msra.mxu0 0.0
    %2181 = vmatprep.subr.mxu0 0.0
    %2182 = vmatpush1.xpose.msra.mxu0 0.0
    %2183 = vmatprep.subr.mxu0 0.0
    %2184 = vmatpush1.xpose.msra.mxu0 0.0
    %2185 = vmatprep.mubr.f32.mxu0 0.0
    %v2186 = vand.u32 %v2115, 4294901760
    %v2187 = vsub.f32 %v2115, %v2186
    %v2188 = vand.u32 %v2187, 4294901760
    %v2189 = vsub.f32 %v2187, %v2188
    %v2190 = vand.u32 %v2189, 4294901760
    %2191 = vmatmul.mubr.f32.gmra.mrb[0].mxu0 %v2190
    %v2192 = vpop.f32.mrb[0].mxu0
    %v2193 = vadd.f32 %v1611, %v2192
    %v2194 = vpop.f32.mrb[0].mxu0
    %2195 = vdwg.mxu0
    %2196 = vmatprep.subr.mxu0 0.0
    %v2197 = vand.u32 %v1617, 4294901760
    %v2198 = vsub.f32 %v1617, %v2197
    %v2199 = vand.u32 %v2198, 4294901760
    %v2200 = vsub.f32 %v2198, %v2199
    %v2201 = vand.u32 %v2200, 4294901760
    %2202 = vmatpush1.xpose.msra.mxu0 %v2201
    %2203 = vmatprep.subr.mxu0 0.0
    %v2204 = vand.u32 %v1620, 4294901760
    %v2205 = vsub.f32 %v1620, %v2204
    %v2206 = vand.u32 %v2205, 4294901760
    %v2207 = vsub.f32 %v2205, %v2206
    %v2208 = vand.u32 %v2207, 4294901760
    %2209 = vmatpush1.xpose.msra.mxu0 %v2208
    %2210 = vmatprep.subr.mxu0 0.0
    %v2211 = vand.u32 %v1623, 4294901760
    %v2212 = vsub.f32 %v1623, %v2211
    %v2213 = vand.u32 %v2212, 4294901760
    %v2214 = vsub.f32 %v2212, %v2213
    %v2215 = vand.u32 %v2214, 4294901760
    %2216 = vmatpush1.xpose.msra.mxu0 %v2215
    %2217 = vmatprep.subr.mxu0 0.0
    %v2218 = vand.u32 %v1626, 4294901760
    %v2219 = vsub.f32 %v1626, %v2218
    %v2220 = vand.u32 %v2219, 4294901760
    %v2221 = vsub.f32 %v2219, %v2220
    %v2222 = vand.u32 %v2221, 4294901760
    %2223 = vmatpush1.xpose.msra.mxu0 %v2222
    %2224 = vmatprep.subr.mxu0 0.0
    %2225 = vmatpush1.xpose.msra.mxu0 0.0
    %2226 = vmatprep.subr.mxu0 0.0
    %2227 = vmatpush1.xpose.msra.mxu0 0.0
    %2228 = vmatprep.subr.mxu0 0.0
    %2229 = vmatpush1.xpose.msra.mxu0 0.0
    %2230 = vmatprep.subr.mxu0 0.0
    %2231 = vmatpush1.xpose.msra.mxu0 0.0
    %2232 = vmatprep.subr.mxu0 0.0
    %2233 = vmatpush1.xpose.msra.mxu0 0.0
    %2234 = vmatprep.subr.mxu0 0.0
    %2235 = vmatpush1.xpose.msra.mxu0 0.0
    %2236 = vmatprep.subr.mxu0 0.0
    %2237 = vmatpush1.xpose.msra.mxu0 0.0
    %2238 = vmatprep.subr.mxu0 0.0
    %2239 = vmatpush1.xpose.msra.mxu0 0.0
    %2240 = vmatprep.subr.mxu0 0.0
    %2241 = vmatpush1.xpose.msra.mxu0 0.0
    %2242 = vmatprep.subr.mxu0 0.0
    %2243 = vmatpush1.xpose.msra.mxu0 0.0
    %2244 = vmatprep.subr.mxu0 0.0
    %2245 = vmatpush1.xpose.msra.mxu0 0.0
    %2246 = vmatprep.subr.mxu0 0.0
    %2247 = vmatpush1.xpose.msra.mxu0 0.0
    %2248 = vmatprep.subr.mxu0 0.0
    %2249 = vmatpush1.xpose.msra.mxu0 0.0
    %2250 = vmatprep.subr.mxu0 0.0
    %2251 = vmatpush1.xpose.msra.mxu0 0.0
    %2252 = vmatprep.subr.mxu0 0.0
    %2253 = vmatpush1.xpose.msra.mxu0 0.0
    %2254 = vmatprep.subr.mxu0 0.0
    %2255 = vmatpush1.xpose.msra.mxu0 0.0
    %2256 = vmatprep.subr.mxu0 0.0
    %2257 = vmatpush1.xpose.msra.mxu0 0.0
    %2258 = vmatprep.subr.mxu0 0.0
    %2259 = vmatpush1.xpose.msra.mxu0 0.0
    %2260 = vmatprep.subr.mxu0 0.0
    %2261 = vmatpush1.xpose.msra.mxu0 0.0
    %2262 = vmatprep.subr.mxu0 0.0
    %2263 = vmatpush1.xpose.msra.mxu0 0.0
    %2264 = vmatprep.subr.mxu0 0.0
    %2265 = vmatpush1.xpose.msra.mxu0 0.0
    %2266 = vmatprep.subr.mxu0 0.0
    %2267 = vmatpush1.xpose.msra.mxu0 0.0
    %2268 = vmatprep.subr.mxu0 0.0
    %2269 = vmatpush1.xpose.msra.mxu0 0.0
    %2270 = vmatprep.subr.mxu0 0.0
    %2271 = vmatpush1.xpose.msra.mxu0 0.0
    %2272 = vmatprep.subr.mxu0 0.0
    %2273 = vmatpush1.xpose.msra.mxu0 0.0
    %2274 = vmatprep.subr.mxu0 0.0
    %2275 = vmatpush1.xpose.msra.mxu0 0.0
    %2276 = vmatprep.subr.mxu0 0.0
    %2277 = vmatpush1.xpose.msra.mxu0 0.0
    %2278 = vmatprep.subr.mxu0 0.0
    %2279 = vmatpush1.xpose.msra.mxu0 0.0
    %2280 = vmatprep.mubr.f32.mxu0 0.0
    %v2281 = vand.u32 %v2115, 4294901760
    %2282 = vmatmul.mubr.f32.gmra.mrb[0].mxu0 %v2281
    %v2283 = vpop.f32.mrb[0].mxu0
    %v2284 = vadd.f32 %v2193, %v2283
    %v2285 = vpop.f32.mrb[0].mxu0
    %2286 = vdwg.mxu0
    %2287 = vmatprep.subr.mxu0 0.0
    %v2288 = vand.u32 %v1617, 4294901760
    %v2289 = vsub.f32 %v1617, %v2288
    %2290 = vmatpush1.xpose.msra.mxu0 %v2289
    %2291 = vmatprep.subr.mxu0 0.0
    %v2292 = vand.u32 %v1620, 4294901760
    %v2293 = vsub.f32 %v1620, %v2292
    %2294 = vmatpush1.xpose.msra.mxu0 %v2293
    %2295 = vmatprep.subr.mxu0 0.0
    %v2296 = vand.u32 %v1623, 4294901760
    %v2297 = vsub.f32 %v1623, %v2296
    %2298 = vmatpush1.xpose.msra.mxu0 %v2297
    %2299 = vmatprep.subr.mxu0 0.0
    %v2300 = vand.u32 %v1626, 4294901760
    %v2301 = vsub.f32 %v1626, %v2300
    %2302 = vmatpush1.xpose.msra.mxu0 %v2301
    %2303 = vmatprep.subr.mxu0 0.0
    %2304 = vmatpush1.xpose.msra.mxu0 0.0
    %2305 = vmatprep.subr.mxu0 0.0
    %2306 = vmatpush1.xpose.msra.mxu0 0.0
    %2307 = vmatprep.subr.mxu0 0.0
    %2308 = vmatpush1.xpose.msra.mxu0 0.0
    %2309 = vmatprep.subr.mxu0 0.0
    %2310 = vmatpush1.xpose.msra.mxu0 0.0
    %2311 = vmatprep.subr.mxu0 0.0
    %2312 = vmatpush1.xpose.msra.mxu0 0.0
    %2313 = vmatprep.subr.mxu0 0.0
    %2314 = vmatpush1.xpose.msra.mxu0 0.0
    %2315 = vmatprep.subr.mxu0 0.0
    %2316 = vmatpush1.xpose.msra.mxu0 0.0
    %2317 = vmatprep.subr.mxu0 0.0
    %2318 = vmatpush1.xpose.msra.mxu0 0.0
    %2319 = vmatprep.subr.mxu0 0.0
    %2320 = vmatpush1.xpose.msra.mxu0 0.0
    %2321 = vmatprep.subr.mxu0 0.0
    %2322 = vmatpush1.xpose.msra.mxu0 0.0
    %2323 = vmatprep.subr.mxu0 0.0
    %2324 = vmatpush1.xpose.msra.mxu0 0.0
    %2325 = vmatprep.subr.mxu0 0.0
    %2326 = vmatpush1.xpose.msra.mxu0 0.0
    %2327 = vmatprep.subr.mxu0 0.0
    %2328 = vmatpush1.xpose.msra.mxu0 0.0
    %2329 = vmatprep.subr.mxu0 0.0
    %2330 = vmatpush1.xpose.msra.mxu0 0.0
    %2331 = vmatprep.subr.mxu0 0.0
    %2332 = vmatpush1.xpose.msra.mxu0 0.0
    %2333 = vmatprep.subr.mxu0 0.0
    %2334 = vmatpush1.xpose.msra.mxu0 0.0
    %2335 = vmatprep.subr.mxu0 0.0
    %2336 = vmatpush1.xpose.msra.mxu0 0.0
    %2337 = vmatprep.subr.mxu0 0.0
    %2338 = vmatpush1.xpose.msra.mxu0 0.0
    %2339 = vmatprep.subr.mxu0 0.0
    %2340 = vmatpush1.xpose.msra.mxu0 0.0
    %2341 = vmatprep.subr.mxu0 0.0
    %2342 = vmatpush1.xpose.msra.mxu0 0.0
    %2343 = vmatprep.subr.mxu0 0.0
    %2344 = vmatpush1.xpose.msra.mxu0 0.0
    %2345 = vmatprep.subr.mxu0 0.0
    %2346 = vmatpush1.xpose.msra.mxu0 0.0
    %2347 = vmatprep.subr.mxu0 0.0
    %2348 = vmatpush1.xpose.msra.mxu0 0.0
    %2349 = vmatprep.subr.mxu0 0.0
    %2350 = vmatpush1.xpose.msra.mxu0 0.0
    %2351 = vmatprep.subr.mxu0 0.0
    %2352 = vmatpush1.xpose.msra.mxu0 0.0
    %2353 = vmatprep.subr.mxu0 0.0
    %2354 = vmatpush1.xpose.msra.mxu0 0.0
    %2355 = vmatprep.subr.mxu0 0.0
    %2356 = vmatpush1.xpose.msra.mxu0 0.0
    %2357 = vmatprep.subr.mxu0 0.0
    %2358 = vmatpush1.xpose.msra.mxu0 0.0
    %2359 = vmatprep.mubr.f32.mxu0 0.0
    %v2360 = vand.u32 %v2115, 4294901760
    %v2361 = vsub.f32 %v2115, %v2360
    %2362 = vmatmul.mubr.f32.gmra.mrb[0].mxu0 %v2361
    %v2363 = vpop.f32.mrb[0].mxu0
    %v2364 = vadd.f32 %v2284, %v2363
    %v2365 = vpop.f32.mrb[0].mxu0
    %2366 = vdwg.mxu0
    %2367 = vmatprep.subr.mxu0 0.0
    %v2368 = vand.u32 %v1617, 4294901760
    %2369 = vmatpush1.xpose.msra.mxu0 %v2368
    %2370 = vmatprep.subr.mxu0 0.0
    %v2371 = vand.u32 %v1620, 4294901760
    %2372 = vmatpush1.xpose.msra.mxu0 %v2371
    %2373 = vmatprep.subr.mxu0 0.0
    %v2374 = vand.u32 %v1623, 4294901760
    %2375 = vmatpush1.xpose.msra.mxu0 %v2374
    %2376 = vmatprep.subr.mxu0 0.0
    %v2377 = vand.u32 %v1626, 4294901760
    %2378 = vmatpush1.xpose.msra.mxu0 %v2377
    %2379 = vmatprep.subr.mxu0 0.0
    %2380 = vmatpush1.xpose.msra.mxu0 0.0
    %2381 = vmatprep.subr.mxu0 0.0
    %2382 = vmatpush1.xpose.msra.mxu0 0.0
    %2383 = vmatprep.subr.mxu0 0.0
    %2384 = vmatpush1.xpose.msra.mxu0 0.0
    %2385 = vmatprep.subr.mxu0 0.0
    %2386 = vmatpush1.xpose.msra.mxu0 0.0
    %2387 = vmatprep.subr.mxu0 0.0
    %2388 = vmatpush1.xpose.msra.mxu0 0.0
    %2389 = vmatprep.subr.mxu0 0.0
    %2390 = vmatpush1.xpose.msra.mxu0 0.0
    %2391 = vmatprep.subr.mxu0 0.0
    %2392 = vmatpush1.xpose.msra.mxu0 0.0
    %2393 = vmatprep.subr.mxu0 0.0
    %2394 = vmatpush1.xpose.msra.mxu0 0.0
    %2395 = vmatprep.subr.mxu0 0.0
    %2396 = vmatpush1.xpose.msra.mxu0 0.0
    %2397 = vmatprep.subr.mxu0 0.0
    %2398 = vmatpush1.xpose.msra.mxu0 0.0
    %2399 = vmatprep.subr.mxu0 0.0
    %2400 = vmatpush1.xpose.msra.mxu0 0.0
    %2401 = vmatprep.subr.mxu0 0.0
    %2402 = vmatpush1.xpose.msra.mxu0 0.0
    %2403 = vmatprep.subr.mxu0 0.0
    %2404 = vmatpush1.xpose.msra.mxu0 0.0
    %2405 = vmatprep.subr.mxu0 0.0
    %2406 = vmatpush1.xpose.msra.mxu0 0.0
    %2407 = vmatprep.subr.mxu0 0.0
    %2408 = vmatpush1.xpose.msra.mxu0 0.0
    %2409 = vmatprep.subr.mxu0 0.0
    %2410 = vmatpush1.xpose.msra.mxu0 0.0
    %2411 = vmatprep.subr.mxu0 0.0
    %2412 = vmatpush1.xpose.msra.mxu0 0.0
    %2413 = vmatprep.subr.mxu0 0.0
    %2414 = vmatpush1.xpose.msra.mxu0 0.0
    %2415 = vmatprep.subr.mxu0 0.0
    %2416 = vmatpush1.xpose.msra.mxu0 0.0
    %2417 = vmatprep.subr.mxu0 0.0
    %2418 = vmatpush1.xpose.msra.mxu0 0.0
    %2419 = vmatprep.subr.mxu0 0.0
    %2420 = vmatpush1.xpose.msra.mxu0 0.0
    %2421 = vmatprep.subr.mxu0 0.0
    %2422 = vmatpush1.xpose.msra.mxu0 0.0
    %2423 = vmatprep.subr.mxu0 0.0
    %2424 = vmatpush1.xpose.msra.mxu0 0.0
    %2425 = vmatprep.subr.mxu0 0.0
    %2426 = vmatpush1.xpose.msra.mxu0 0.0
    %2427 = vmatprep.subr.mxu0 0.0
    %2428 = vmatpush1.xpose.msra.mxu0 0.0
    %2429 = vmatprep.subr.mxu0 0.0
    %2430 = vmatpush1.xpose.msra.mxu0 0.0
    %2431 = vmatprep.subr.mxu0 0.0
    %2432 = vmatpush1.xpose.msra.mxu0 0.0
    %2433 = vmatprep.subr.mxu0 0.0
    %2434 = vmatpush1.xpose.msra.mxu0 0.0
    %2435 = vmatprep.mubr.f32.mxu0 0.0
    %v2436 = vand.u32 %v2115, 4294901760
    %v2437 = vsub.f32 %v2115, %v2436
    %v2438 = vand.u32 %v2437, 4294901760
    %2439 = vmatmul.mubr.f32.gmra.mrb[0].mxu0 %v2438
    %v2440 = vpop.f32.mrb[0].mxu0
    %v2441 = vadd.f32 %v2364, %v2440
    %v2442 = vpop.f32.mrb[0].mxu0
    %2443 = vdwg.mxu0
    %2444 = vmatprep.subr.mxu0 0.0
    %v2445 = vand.u32 %v1617, 4294901760
    %v2446 = vsub.f32 %v1617, %v2445
    %v2447 = vand.u32 %v2446, 4294901760
    %2448 = vmatpush1.xpose.msra.mxu0 %v2447
    %2449 = vmatprep.subr.mxu0 0.0
    %v2450 = vand.u32 %v1620, 4294901760
    %v2451 = vsub.f32 %v1620, %v2450
    %v2452 = vand.u32 %v2451, 4294901760
    %2453 = vmatpush1.xpose.msra.mxu0 %v2452
    %2454 = vmatprep.subr.mxu0 0.0
    %v2455 = vand.u32 %v1623, 4294901760
    %v2456 = vsub.f32 %v1623, %v2455
    %v2457 = vand.u32 %v2456, 4294901760
    %2458 = vmatpush1.xpose.msra.mxu0 %v2457
    %2459 = vmatprep.subr.mxu0 0.0
    %v2460 = vand.u32 %v1626, 4294901760
    %v2461 = vsub.f32 %v1626, %v2460
    %v2462 = vand.u32 %v2461, 4294901760
    %2463 = vmatpush1.xpose.msra.mxu0 %v2462
    %2464 = vmatprep.subr.mxu0 0.0
    %2465 = vmatpush1.xpose.msra.mxu0 0.0
    %2466 = vmatprep.subr.mxu0 0.0
    %2467 = vmatpush1.xpose.msra.mxu0 0.0
    %2468 = vmatprep.subr.mxu0 0.0
    %2469 = vmatpush1.xpose.msra.mxu0 0.0
    %2470 = vmatprep.subr.mxu0 0.0
    %2471 = vmatpush1.xpose.msra.mxu0 0.0
    %2472 = vmatprep.subr.mxu0 0.0
    %2473 = vmatpush1.xpose.msra.mxu0 0.0
    %2474 = vmatprep.subr.mxu0 0.0
    %2475 = vmatpush1.xpose.msra.mxu0 0.0
    %2476 = vmatprep.subr.mxu0 0.0
    %2477 = vmatpush1.xpose.msra.mxu0 0.0
    %2478 = vmatprep.subr.mxu0 0.0
    %2479 = vmatpush1.xpose.msra.mxu0 0.0
    %2480 = vmatprep.subr.mxu0 0.0
    %2481 = vmatpush1.xpose.msra.mxu0 0.0
    %2482 = vmatprep.subr.mxu0 0.0
    %2483 = vmatpush1.xpose.msra.mxu0 0.0
    %2484 = vmatprep.subr.mxu0 0.0
    %2485 = vmatpush1.xpose.msra.mxu0 0.0
    %2486 = vmatprep.subr.mxu0 0.0
    %2487 = vmatpush1.xpose.msra.mxu0 0.0
    %2488 = vmatprep.subr.mxu0 0.0
    %2489 = vmatpush1.xpose.msra.mxu0 0.0
    %2490 = vmatprep.subr.mxu0 0.0
    %2491 = vmatpush1.xpose.msra.mxu0 0.0
    %2492 = vmatprep.subr.mxu0 0.0
    %2493 = vmatpush1.xpose.msra.mxu0 0.0
    %2494 = vmatprep.subr.mxu0 0.0
    %2495 = vmatpush1.xpose.msra.mxu0 0.0
    %2496 = vmatprep.subr.mxu0 0.0
    %2497 = vmatpush1.xpose.msra.mxu0 0.0
    %2498 = vmatprep.subr.mxu0 0.0
    %2499 = vmatpush1.xpose.msra.mxu0 0.0
    %2500 = vmatprep.subr.mxu0 0.0
    %2501 = vmatpush1.xpose.msra.mxu0 0.0
    %2502 = vmatprep.subr.mxu0 0.0
    %2503 = vmatpush1.xpose.msra.mxu0 0.0
    %2504 = vmatprep.subr.mxu0 0.0
    %2505 = vmatpush1.xpose.msra.mxu0 0.0
    %2506 = vmatprep.subr.mxu0 0.0
    %2507 = vmatpush1.xpose.msra.mxu0 0.0
    %2508 = vmatprep.subr.mxu0 0.0
    %2509 = vmatpush1.xpose.msra.mxu0 0.0
    %2510 = vmatprep.subr.mxu0 0.0
    %2511 = vmatpush1.xpose.msra.mxu0 0.0
    %2512 = vmatprep.subr.mxu0 0.0
    %2513 = vmatpush1.xpose.msra.mxu0 0.0
    %2514 = vmatprep.subr.mxu0 0.0
    %2515 = vmatpush1.xpose.msra.mxu0 0.0
    %2516 = vmatprep.subr.mxu0 0.0
    %2517 = vmatpush1.xpose.msra.mxu0 0.0
    %2518 = vmatprep.subr.mxu0 0.0
    %2519 = vmatpush1.xpose.msra.mxu0 0.0
    %2520 = vmatprep.mubr.f32.mxu0 0.0
    %v2521 = vand.u32 %v2115, 4294901760
    %2522 = vmatmul.mubr.f32.gmra.mrb[0].mxu0 %v2521
    %v2523 = vpop.f32.mrb[0].mxu0
    %v2524 = vadd.f32 %v2441, %v2523
    %v2525 = vpop.f32.mrb[0].mxu0
    %2526 = vdwg.mxu0
    %2527 = vmatprep.subr.mxu0 0.0
    %v2528 = vand.u32 %v1617, 4294901760
    %2529 = vmatpush1.xpose.msra.mxu0 %v2528
    %2530 = vmatprep.subr.mxu0 0.0
    %v2531 = vand.u32 %v1620, 4294901760
    %2532 = vmatpush1.xpose.msra.mxu0 %v2531
    %2533 = vmatprep.subr.mxu0 0.0
    %v2534 = vand.u32 %v1623, 4294901760
    %2535 = vmatpush1.xpose.msra.mxu0 %v2534
    %2536 = vmatprep.subr.mxu0 0.0
    %v2537 = vand.u32 %v1626, 4294901760
    %2538 = vmatpush1.xpose.msra.mxu0 %v2537
    %2539 = vmatprep.subr.mxu0 0.0
    %2540 = vmatpush1.xpose.msra.mxu0 0.0
    %2541 = vmatprep.subr.mxu0 0.0
    %2542 = vmatpush1.xpose.msra.mxu0 0.0
    %2543 = vmatprep.subr.mxu0 0.0
    %2544 = vmatpush1.xpose.msra.mxu0 0.0
    %2545 = vmatprep.subr.mxu0 0.0
    %2546 = vmatpush1.xpose.msra.mxu0 0.0
    %2547 = vmatprep.subr.mxu0 0.0
    %2548 = vmatpush1.xpose.msra.mxu0 0.0
    %2549 = vmatprep.subr.mxu0 0.0
    %2550 = vmatpush1.xpose.msra.mxu0 0.0
    %2551 = vmatprep.subr.mxu0 0.0
    %2552 = vmatpush1.xpose.msra.mxu0 0.0
    %2553 = vmatprep.subr.mxu0 0.0
    %2554 = vmatpush1.xpose.msra.mxu0 0.0
    %2555 = vmatprep.subr.mxu0 0.0
    %2556 = vmatpush1.xpose.msra.mxu0 0.0
    %2557 = vmatprep.subr.mxu0 0.0
    %2558 = vmatpush1.xpose.msra.mxu0 0.0
    %2559 = vmatprep.subr.mxu0 0.0
    %2560 = vmatpush1.xpose.msra.mxu0 0.0
    %2561 = vmatprep.subr.mxu0 0.0
    %2562 = vmatpush1.xpose.msra.mxu0 0.0
    %2563 = vmatprep.subr.mxu0 0.0
    %2564 = vmatpush1.xpose.msra.mxu0 0.0
    %2565 = vmatprep.subr.mxu0 0.0
    %2566 = vmatpush1.xpose.msra.mxu0 0.0
    %2567 = vmatprep.subr.mxu0 0.0
    %2568 = vmatpush1.xpose.msra.mxu0 0.0
    %2569 = vmatprep.subr.mxu0 0.0
    %2570 = vmatpush1.xpose.msra.mxu0 0.0
    %2571 = vmatprep.subr.mxu0 0.0
    %2572 = vmatpush1.xpose.msra.mxu0 0.0
    %2573 = vmatprep.subr.mxu0 0.0
    %2574 = vmatpush1.xpose.msra.mxu0 0.0
    %2575 = vmatprep.subr.mxu0 0.0
    %2576 = vmatpush1.xpose.msra.mxu0 0.0
    %2577 = vmatprep.subr.mxu0 0.0
    %2578 = vmatpush1.xpose.msra.mxu0 0.0
    %2579 = vmatprep.subr.mxu0 0.0
    %2580 = vmatpush1.xpose.msra.mxu0 0.0
    %2581 = vmatprep.subr.mxu0 0.0
    %2582 = vmatpush1.xpose.msra.mxu0 0.0
    %2583 = vmatprep.subr.mxu0 0.0
    %2584 = vmatpush1.xpose.msra.mxu0 0.0
    %2585 = vmatprep.subr.mxu0 0.0
    %2586 = vmatpush1.xpose.msra.mxu0 0.0
    %2587 = vmatprep.subr.mxu0 0.0
    %2588 = vmatpush1.xpose.msra.mxu0 0.0
    %2589 = vmatprep.subr.mxu0 0.0
    %2590 = vmatpush1.xpose.msra.mxu0 0.0
    %2591 = vmatprep.subr.mxu0 0.0
    %2592 = vmatpush1.xpose.msra.mxu0 0.0
    %2593 = vmatprep.subr.mxu0 0.0
    %2594 = vmatpush1.xpose.msra.mxu0 0.0
    %2595 = vmatprep.mubr.f32.mxu0 0.0
    %v2596 = vand.u32 %v2115, 4294901760
    %2597 = vmatmul.mubr.f32.gmra.mrb[0].mxu0 %v2596
    %v2598 = vpop.f32.mrb[0].mxu0
    %v2599 = vadd.f32 %v2524, %v2598
    %v2600 = vpop.f32.mrb[0].mxu0
    %2601 = vdwg.mxu0
    %v2602 = vtanh.pop %v2599
    %2603 = vst.msk [vmem:[#allocation8] sm:$0xff] %vm72, %v2602
    // Predicated region
    $region34: #{tpu_custom_call.1} parent=1 // pred_check
      _
    $region35: #{tpu_custom_call.1} parent=1 // pred_check_branch
      %2605 = sbr.rel (0) target = $region37
    $region36: #{tpu_custom_call.1} parent=1 // pred_region
      %s2607 = ssub.s32 128, 128
      %2608 = vsyncadd [#allocation4], %s2607
      %s2610 = sshll.u32 [#allocation8], 4
      %s2611 = int_to_ptr.vmem [resolvable:$true] %s2610
      %2613 = dma.vmem_to_hbm [thread:$0]  %s2611, 128, %s5, [#allocation4]
    $region37: #{tpu_custom_call.1} parent=1 // pred_fallthru
      _
    // Predicated region
    $region38: #{tpu_custom_call.1} parent=1 // pred_check
      _
    $region39: #{tpu_custom_call.1} parent=1 // pred_check_branch
      %2615 = sbr.rel (0) target = $region41
    $region40: #{tpu_custom_call.1} parent=1 // pred_region
      %2616 = dma.done [#allocation4], 128
    $region41: #{tpu_custom_call.1} parent=1 // pred_fallthru
      _
    %2617 = vsyncpa [#allocation3], 1
    %2618 = vsyncpa [#allocation6], 1
    %2619 = vsyncpa [#allocation4], 1

</llo_original>
